<compile_context>
chip_gen: v7x
topology: tpu7x:2x2x1
jax: 0.10.0
libtpu: 0.0.40
codegen_flags: <defaults>
</compile_context>

<pallas_src>
import functools
import math

import jax
import jax.numpy as jnp
from jax.experimental import pallas as pl
from jax.experimental.pallas import tpu as pltpu


_LN_EPS = 1e-5
_GELU_C = math.sqrt(2.0 / math.pi)

_M_TILES = (2048, 1024, 512, 256, 128, 64, 32, 16, 8)
_NK_TILES = (512, 256, 128)
_SEQ_TILES = (512, 256, 128)          # query / kv tiles for attention (>=128 rows)


# ----------------------------- VMEM budgeting -----------------------------

@functools.lru_cache(maxsize=None)
def _vmem_limit_bytes():
    """Per-generation VMEM budget: ~85% of physical (v5e/v6e ~108MiB, v7x ~54MiB)."""
    try:
        cap = pltpu.get_tpu_info().vmem_capacity_bytes
    except Exception:                  # conservative fallback sized for v7x
        cap = 64 * 1024 * 1024
    return int(cap * 0.85)


def _tile_budget():
    # leave headroom inside the compiler limit for internal scratch
    return int(_vmem_limit_bytes() * 0.9)


def _divisor_candidates(dim, candidates):
    cands = [c for c in candidates if c <= dim and dim % c == 0]
    return cands if cands else [dim]


def _select_matmul_tiles(M, N, K, x_bytes, out_bytes, budget):
    cand = {"m": _divisor_candidates(M, _M_TILES),
            "n": _divisor_candidates(N, _NK_TILES),
            "k": _divisor_candidates(K, _NK_TILES)}
    idx = {"m": 0, "n": 0, "k": 0}

    def tiles():
        return cand["m"][idx["m"]], cand["n"][idx["n"]], cand["k"][idx["k"]]

    def footprint():
        tm, tn, tk = tiles()
        return (2 * tm * tk * x_bytes            # double-buffered x
                + 2 * tk * tn * 2                # double-buffered bf16 weights
                + 2 * tm * tn * out_bytes        # double-buffered output
                + tm * tn * 4                    # f32 accumulator
                + 4 * tn * 4)                    # bias

    while footprint() > budget:
        shrinkable = [(cand[a][idx[a]], a) for a in ("k", "n", "m")
                      if idx[a] + 1 < len(cand[a])]
        if not shrinkable:
            break
        shrinkable.sort(reverse=True)            # shrink the largest tile first
        idx[shrinkable[0][1]] += 1
    return tiles()


def _select_res_ln_tiles(M, N, K, budget):
    tms = _divisor_candidates(M, _M_TILES)
    tks = _divisor_candidates(K, _NK_TILES)
    im, ik = 0, 0

    def footprint():
        tm, tk = tms[im], tks[ik]
        return (tm * N * 4                       # f32 accumulator (N kept whole)
                + 2 * tm * tk * 2                # x double-buffer (bf16)
                + 2 * tk * N * 2                 # w double-buffer (bf16)
                + 2 * tm * N * 2                 # residual double-buffer (bf16)
                + 2 * tm * N * 2                 # output double-buffer (bf16)
                + 12 * N * 4)                    # bias / gamma / beta

    while footprint() > budget:
        if im + 1 < len(tms):
            im += 1
        elif ik + 1 < len(tks):
            ik += 1
        else:
            break
    return tms[im], tks[ik]


# ----------------------------- Pallas kernels -----------------------------

def matmul_kernel(x_ref, w_ref, b_ref, o_ref, acc_ref, *, activation):
    # Tiled o = act(x @ w + b).  Grid = (M/TM, N/TN, K/TK); K is the reduction axis.
    k = pl.program_id(2)

    @pl.when(k == 0)
    def _():
        # Fold bias into accumulator init (once per (i, j) tile).
        acc_ref[...] = jnp.broadcast_to(b_ref[...].astype(jnp.float32), acc_ref.shape)

    acc_ref[...] += jnp.dot(
        x_ref[...].astype(jnp.bfloat16),
        w_ref[...].astype(jnp.bfloat16),
        preferred_element_type=jnp.float32,
    )

    @pl.when(k == pl.num_programs(2) - 1)
    def _():
        acc = acc_ref[...]
        if activation == "gelu":
            # tanh-approximate GELU (EUP tanh); ~1e-3 from exact erf nn.GELU
            acc = 0.5 * acc * (1.0 + jnp.tanh(_GELU_C * (acc + 0.044715 * acc * acc * acc)))
        o_ref[...] = acc.astype(o_ref.dtype)


def matmul_res_ln_kernel(x_ref, w_ref, b_ref, res_ref, g_ref, beta_ref, o_ref, acc_ref):
    # Tiled o = LayerNorm(res + x @ w + b).  Grid = (M/TM, K/TK); N (= d_model) kept
    # whole so the LayerNorm reduction lives inside one tile.
    k = pl.program_id(1)

    @pl.when(k == 0)
    def _():
        acc_ref[...] = jnp.broadcast_to(b_ref[...].astype(jnp.float32), acc_ref.shape)

    acc_ref[...] += jnp.dot(
        x_ref[...].astype(jnp.bfloat16),
        w_ref[...].astype(jnp.bfloat16),
        preferred_element_type=jnp.float32,
    )

    @pl.when(k == pl.num_programs(1) - 1)
    def _():
        z = acc_ref[...] + res_ref[...].astype(jnp.float32)
        mu = jnp.mean(z, axis=-1, keepdims=True)
        var = jnp.mean(jnp.square(z - mu), axis=-1, keepdims=True)
        o_ref[...] = ((z - mu) * jax.lax.rsqrt(var + _LN_EPS) * g_ref[...]
                      + beta_ref[...]).astype(o_ref.dtype)


def layernorm_kernel(x_ref, g_ref, b_ref, o_ref):
    z = x_ref[...].astype(jnp.float32)
    mu = jnp.mean(z, axis=-1, keepdims=True)
    var = jnp.mean(jnp.square(z - mu), axis=-1, keepdims=True)
    o_ref[...] = ((z - mu) * jax.lax.rsqrt(var + _LN_EPS) * g_ref[...]
                  + b_ref[...]).astype(o_ref.dtype)


def flash_attn_kernel(q_ref, k_ref, v_ref, o_ref, m_sc, l_sc, acc_sc, *, scale):
    # One (batch*head, q-tile) pair; online softmax over kv tiles (last grid axis).
    ki = pl.program_id(2)

    @pl.when(ki == 0)
    def _():
        m_sc[...] = jnp.full(m_sc.shape, -jnp.inf, jnp.float32)
        l_sc[...] = jnp.zeros(l_sc.shape, jnp.float32)
        acc_sc[...] = jnp.zeros(acc_sc.shape, jnp.float32)

    q = q_ref[0] * scale               # fold 1/sqrt(dk) into the (tq, dk) operand
    s = jax.lax.dot_general(q, k_ref[0], (((1,), (1,)), ((), ())),
                            preferred_element_type=jnp.float32)
    m_prev = m_sc[...]
    m_new = jnp.maximum(m_prev, jnp.max(s, axis=-1, keepdims=True))
    alpha = jnp.exp(m_prev - m_new)
    p = jnp.exp(s - m_new)
    l_sc[...] = alpha * l_sc[...] + jnp.sum(p, axis=-1, keepdims=True)
    acc_sc[...] = alpha * acc_sc[...] + jnp.dot(
        p.astype(jnp.bfloat16), v_ref[0], preferred_element_type=jnp.float32)
    m_sc[...] = m_new

    @pl.when(ki == pl.num_programs(2) - 1)
    def _():
        inv_l = pl.reciprocal(l_sc[...], approx=True)
        o_ref[0] = (acc_sc[...] * inv_l).astype(o_ref.dtype)


# ----------------------------- kernel wrappers -----------------------------

def matmul(x2d, w, b, activation=None, out_dtype=jnp.bfloat16):
    M, K = x2d.shape
    _, N = w.shape
    TM, TN, TK = _select_matmul_tiles(
        M, N, K, x2d.dtype.itemsize, jnp.dtype(out_dtype).itemsize, _tile_budget())
    kern = functools.partial(matmul_kernel, activation=activation)
    return pl.pallas_call(
        kern,
        out_shape=jax.ShapeDtypeStruct((M, N), out_dtype),
        grid=(M // TM, N // TN, K // TK),
        in_specs=[
            pl.BlockSpec((TM, TK), lambda i, j, k: (i, k)),
            pl.BlockSpec((TK, TN), lambda i, j, k: (k, j)),
            pl.BlockSpec((1, TN), lambda i, j, k: (0, j)),
        ],
        out_specs=pl.BlockSpec((TM, TN), lambda i, j, k: (i, j)),
        scratch_shapes=[pltpu.VMEM((TM, TN), jnp.float32)],
        compiler_params=pltpu.CompilerParams(
            dimension_semantics=("parallel", "parallel", "arbitrary"),
            vmem_limit_bytes=_vmem_limit_bytes(),
        ),
    )(x2d, w, b.reshape(1, N))


def matmul_res_ln(x2d, w, b, res2d, gamma, beta):
    # LayerNorm(res + x @ w + b) with the matmul and LN fused in one kernel; bf16 out.
    M, K = x2d.shape
    _, N = w.shape
    TM, TK = _select_res_ln_tiles(M, N, K, _tile_budget())
    return pl.pallas_call(
        matmul_res_ln_kernel,
        out_shape=jax.ShapeDtypeStruct((M, N), jnp.bfloat16),
        grid=(M // TM, K // TK),
        in_specs=[
            pl.BlockSpec((TM, TK), lambda i, k: (i, k)),
            pl.BlockSpec((TK, N), lambda i, k: (k, 0)),
            pl.BlockSpec((1, N), lambda i, k: (0, 0)),
            pl.BlockSpec((TM, N), lambda i, k: (i, 0)),
            pl.BlockSpec((1, N), lambda i, k: (0, 0)),
            pl.BlockSpec((1, N), lambda i, k: (0, 0)),
        ],
        out_specs=pl.BlockSpec((TM, N), lambda i, k: (i, 0)),
        scratch_shapes=[pltpu.VMEM((TM, N), jnp.float32)],
        compiler_params=pltpu.CompilerParams(
            dimension_semantics=("parallel", "arbitrary"),
            vmem_limit_bytes=_vmem_limit_bytes(),
        ),
    )(x2d, w, b.reshape(1, N), res2d, gamma.reshape(1, N), beta.reshape(1, N))


def layernorm(x2d, gamma, beta):
    M, D = x2d.shape
    TM = _divisor_candidates(M, _M_TILES)[0]
    return pl.pallas_call(
        layernorm_kernel,
        out_shape=jax.ShapeDtypeStruct((M, D), jnp.bfloat16),
        grid=(M // TM,),
        in_specs=[
            pl.BlockSpec((TM, D), lambda i: (i, 0)),
            pl.BlockSpec((1, D), lambda i: (0, 0)),
            pl.BlockSpec((1, D), lambda i: (0, 0)),
        ],
        out_specs=pl.BlockSpec((TM, D), lambda i: (i, 0)),
        compiler_params=pltpu.CompilerParams(
            dimension_semantics=("parallel",),
            vmem_limit_bytes=_vmem_limit_bytes(),
        ),
    )(x2d, gamma.reshape(1, D), beta.reshape(1, D))


def flash_attention(q, k, v, dk):
    # q: (B*H, Sq, dk), k/v: (B*H, Sk, dk) -> (B*H, Sq, dk) bf16
    BH, Sq, _ = q.shape
    _, Sk, _ = k.shape
    tq = _divisor_candidates(Sq, _SEQ_TILES)[0]
    tk = _divisor_candidates(Sk, _SEQ_TILES)[0]
    kern = functools.partial(flash_attn_kernel, scale=1.0 / math.sqrt(dk))
    return pl.pallas_call(
        kern,
        out_shape=jax.ShapeDtypeStruct((BH, Sq, dk), jnp.bfloat16),
        grid=(BH, Sq // tq, Sk // tk),
        in_specs=[
            pl.BlockSpec((1, tq, dk), lambda b, qi, ki: (b, qi, 0)),
            pl.BlockSpec((1, tk, dk), lambda b, qi, ki: (b, ki, 0)),
            pl.BlockSpec((1, tk, dk), lambda b, qi, ki: (b, ki, 0)),
        ],
        out_specs=pl.BlockSpec((1, tq, dk), lambda b, qi, ki: (b, qi, 0)),
        scratch_shapes=[
            pltpu.VMEM((tq, 1), jnp.float32),     # running max
            pltpu.VMEM((tq, 1), jnp.float32),     # running denom
            pltpu.VMEM((tq, dk), jnp.float32),    # f32 output accumulator
        ],
        compiler_params=pltpu.CompilerParams(
            dimension_semantics=("parallel", "parallel", "arbitrary"),
            vmem_limit_bytes=_vmem_limit_bytes(),
        ),
    )(q, k, v)


# ----------------------------- head plumbing (XLA reshapes, DMA-side) ---------

def _split_heads(x2d, B, S, H, dk):
    # (B*S, H*dk) -> (B*H, S, dk)
    return x2d.reshape(B, S, H, dk).transpose(0, 2, 1, 3).reshape(B * H, S, dk)


def _merge_heads(x, B, S, H, dk):
    # (B*H, S, dk) -> (B*S, H*dk)
    return x.reshape(B, H, S, dk).transpose(0, 2, 1, 3).reshape(B * S, H * dk)


# ----------------------------- model components -----------------------------

def encoder_block(x2d, B, S, p, num_heads):
    D = x2d.shape[1]
    dk = D // num_heads
    # fused QKV projection -> head-major layout -> flash attention
    qkv2d = matmul(x2d, p["attn"]["wqkv"], p["attn"]["bqkv"])
    qkv = (qkv2d.reshape(B, S, 3, num_heads, dk)
           .transpose(2, 0, 3, 1, 4).reshape(3, B * num_heads, S, dk))
    attn = flash_attention(qkv[0], qkv[1], qkv[2], dk)
    attn2d = _merge_heads(attn, B, S, num_heads, dk)
    # output projection + residual + LayerNorm fused
    x2d = matmul_res_ln(attn2d, p["attn"]["wo"], p["attn"]["bo"], x2d,
                        p["ln1_g"], p["ln1_b"])
    # FFN: linear1 + GELU fused, then linear2 + residual + LayerNorm fused
    h = matmul(x2d, p["w1"], p["b1"], activation="gelu")
    x2d = matmul_res_ln(h, p["w2"], p["b2"], x2d, p["ln2_g"], p["ln2_b"])
    return x2d


def decoder_block(x2d, enc2d, B, St, Ss, p, num_heads):
    D = x2d.shape[1]
    dk = D // num_heads
    # self-attention (tgt_mask=None in the reference forward)
    qkv2d = matmul(x2d, p["self_attn"]["wqkv"], p["self_attn"]["bqkv"])
    qkv = (qkv2d.reshape(B, St, 3, num_heads, dk)
           .transpose(2, 0, 3, 1, 4).reshape(3, B * num_heads, St, dk))
    attn = flash_attention(qkv[0], qkv[1], qkv[2], dk)
    x2d = matmul_res_ln(_merge_heads(attn, B, St, num_heads, dk),
                        p["self_attn"]["wo"], p["self_attn"]["bo"], x2d,
                        p["ln1_g"], p["ln1_b"])
    # cross-attention: q from decoder stream, fused K/V projection of encoder outs
    q2d = matmul(x2d, p["cross_attn"]["wq"], p["cross_attn"]["bq"])
    kv2d = matmul(enc2d, p["cross_attn"]["wkv"], p["cross_attn"]["bkv"])
    kv = (kv2d.reshape(B, Ss, 2, num_heads, dk)
          .transpose(2, 0, 3, 1, 4).reshape(2, B * num_heads, Ss, dk))
    attn = flash_attention(_split_heads(q2d, B, St, num_heads, dk), kv[0], kv[1], dk)
    x2d = matmul_res_ln(_merge_heads(attn, B, St, num_heads, dk),
                        p["cross_attn"]["wo"], p["cross_attn"]["bo"], x2d,
                        p["ln2_g"], p["ln2_b"])
    # FFN
    h = matmul(x2d, p["w1"], p["b1"], activation="gelu")
    x2d = matmul_res_ln(h, p["w2"], p["b2"], x2d, p["ln3_g"], p["ln3_b"])
    return x2d


def positional_encoding(max_len, d_model):
    position = jnp.arange(max_len, dtype=jnp.float32)[:, None]
    div_term = jnp.exp(
        jnp.arange(0, d_model, 2, dtype=jnp.float32) * (-math.log(10000.0) / d_model)
    )
    pe = jnp.zeros((max_len, d_model), jnp.float32)
    pe = pe.at[:, 0::2].set(jnp.sin(position * div_term))
    pe = pe.at[:, 1::2].set(jnp.cos(position * div_term[: d_model // 2]))
    return pe


def embed(tokens, emb_w, pe, d_model):
    # TODO(synk): embedding gather stays in XLA (data-dependent gather; no clean
    # rectangular BlockSpec equivalent at this size).
    x = jnp.take(emb_w, tokens, axis=0) * math.sqrt(d_model)
    return (x + pe[None, : tokens.shape[1], :]).astype(jnp.bfloat16)


def transformer_forward(src, tgt, params, *, num_heads, d_model):
    pe = params["pe"]
    B, Ss = src.shape
    _, St = tgt.shape
    # ------- encoder -------
    x = embed(src, params["enc_emb"], pe, d_model).reshape(B * Ss, d_model)
    for lp in params["enc_layers"]:
        x = encoder_block(x, B, Ss, lp, num_heads)
    enc2d = layernorm(x, params["enc_ln_g"], params["enc_ln_b"])   # bf16
    # ------- decoder -------
    y = embed(tgt, params["dec_emb"], pe, d_model).reshape(B * St, d_model)
    for lp in params["dec_layers"]:
        y = decoder_block(y, enc2d, B, St, Ss, lp, num_heads)
    # final logits projection (f32 output)
    logits = matmul(y, params["final_w"], params["final_b"], out_dtype=jnp.float32)
    return logits.reshape(B, St, -1)


# ----------------------------- parameter init -----------------------------

def init_linear(key, din, dout):
    k1, k2 = jax.random.split(key)
    lim = 1.0 / math.sqrt(din)
    w = jax.random.uniform(k1, (din, dout), jnp.float32, -lim, lim)
    b = jax.random.uniform(k2, (dout,), jnp.float32, -lim, lim)
    return w, b


def init_mha_self(key, d_model):
    ks = jax.random.split(key, 4)
    wq, bq = init_linear(ks[0], d_model, d_model)
    wk, bk = init_linear(ks[1], d_model, d_model)
    wv, bv = init_linear(ks[2], d_model, d_model)
    wo, bo = init_linear(ks[3], d_model, d_model)
    return {
        "wqkv": jnp.concatenate([wq, wk, wv], axis=1).astype(jnp.bfloat16),
        "bqkv": jnp.concatenate([bq, bk, bv], axis=0),
        "wo": wo.astype(jnp.bfloat16), "bo": bo,
    }


def init_mha_cross(key, d_model):
    ks = jax.random.split(key, 4)
    wq, bq = init_linear(ks[0], d_model, d_model)
    wk, bk = init_linear(ks[1], d_model, d_model)
    wv, bv = init_linear(ks[2], d_model, d_model)
    wo, bo = init_linear(ks[3], d_model, d_model)
    return {
        "wq": wq.astype(jnp.bfloat16), "bq": bq,
        "wkv": jnp.concatenate([wk, wv], axis=1).astype(jnp.bfloat16),
        "bkv": jnp.concatenate([bk, bv], axis=0),
        "wo": wo.astype(jnp.bfloat16), "bo": bo,
    }


def init_encoder_block(key, d_model, d_ff):
    ka, k1, k2 = jax.random.split(key, 3)
    w1, b1 = init_linear(k1, d_model, d_ff)
    w2, b2 = init_linear(k2, d_ff, d_model)
    return {
        "attn": init_mha_self(ka, d_model),
        "w1": w1.astype(jnp.bfloat16), "b1": b1,
        "w2": w2.astype(jnp.bfloat16), "b2": b2,
        "ln1_g": jnp.ones((d_model,)), "ln1_b": jnp.zeros((d_model,)),
        "ln2_g": jnp.ones((d_model,)), "ln2_b": jnp.zeros((d_model,)),
    }


def init_decoder_block(key, d_model, d_ff):
    ka, kc, k1, k2 = jax.random.split(key, 4)
    w1, b1 = init_linear(k1, d_model, d_ff)
    w2, b2 = init_linear(k2, d_ff, d_model)
    return {
        "self_attn": init_mha_self(ka, d_model),
        "cross_attn": init_mha_cross(kc, d_model),
        "w1": w1.astype(jnp.bfloat16), "b1": b1,
        "w2": w2.astype(jnp.bfloat16), "b2": b2,
        "ln1_g": jnp.ones((d_model,)), "ln1_b": jnp.zeros((d_model,)),
        "ln2_g": jnp.ones((d_model,)), "ln2_b": jnp.zeros((d_model,)),
        "ln3_g": jnp.ones((d_model,)), "ln3_b": jnp.zeros((d_model,)),
    }


def init_transformer(key, d_model, d_ff, n_layers, vocab_size, max_len):
    keys = jax.random.split(key, 3 + 2 * n_layers)
    params = {
        "enc_emb": jax.random.normal(keys[0], (vocab_size, d_model), jnp.float32),
        "dec_emb": jax.random.normal(keys[1], (vocab_size, d_model), jnp.float32),
        "pe": positional_encoding(max_len, d_model),
        "enc_ln_g": jnp.ones((d_model,)), "enc_ln_b": jnp.zeros((d_model,)),
    }
    fw, fb = init_linear(keys[2], d_model, vocab_size)
    params["final_w"], params["final_b"] = fw.astype(jnp.bfloat16), fb
    params["enc_layers"] = [
        init_encoder_block(keys[3 + i], d_model, d_ff) for i in range(n_layers)
    ]
    params["dec_layers"] = [
        init_decoder_block(keys[3 + n_layers + i], d_model, d_ff) for i in range(n_layers)
    ]
    return params


# ----------------------------- main -----------------------------

if __name__ == "__main__":
    d_model = 32
    num_heads = 4
    d_ff = 64
    seq_len = 8
    n_layers = 2
    vocab_size = 64
    batch = 2

    key = jax.random.PRNGKey(0)
    kp, ks, kt = jax.random.split(key, 3)
    params = init_transformer(kp, d_model, d_ff, n_layers, vocab_size, max_len=seq_len)

    src = jax.random.randint(ks, (batch, seq_len), 0, vocab_size, dtype=jnp.int32)
    tgt = jax.random.randint(kt, (batch, seq_len), 0, vocab_size, dtype=jnp.int32)

    fwd = jax.jit(functools.partial(transformer_forward,
                                    num_heads=num_heads, d_model=d_model))
    logits = fwd(src, tgt, params)
    logits = jax.block_until_ready(logits)
    assert logits.shape == (batch, seq_len, vocab_size)
    assert bool(jnp.all(jnp.isfinite(logits)))
    print("KERNEL_OK")
</pallas_src>

<mosaic_0001>
module attributes {stable_mosaic.version = 11 : i64} {
  func.func @matmul_kernel(%arg0: i32, %arg1: i32, %arg2: i32, %arg3: memref<16x32xbf16, #tpu.memory_space<vmem>>, %arg4: memref<32x96xbf16, #tpu.memory_space<vmem>>, %arg5: memref<1x96xf32, #tpu.memory_space<vmem>>, %arg6: memref<16x96xbf16, #tpu.memory_space<vmem>>, %arg7: memref<16x96xf32, #tpu.memory_space<vmem>>) attributes {dimension_semantics = [#tpu.dimension_semantics<parallel>, #tpu.dimension_semantics<parallel>, #tpu.dimension_semantics<arbitrary>], iteration_bounds = array<i64: 1, 1, 1>, scalar_prefetch = 0 : i64, scratch_operands = 1 : i64, tpu.core_type = #tpu.core_type<tc>, window_params = [{transform_indices = @transform_0, window_bounds = array<i64: 16, 32>}, {transform_indices = @transform_1, window_bounds = array<i64: 32, 96>}, {transform_indices = @transform_2, window_bounds = array<i64: 1, 96>}, {transform_indices = @transform_3, window_bounds = array<i64: 16, 96>}]} {
    %c0_i32 = arith.constant 0 : i32
    %0 = arith.cmpi eq, %arg2, %c0_i32 : i32
    %1 = arith.extui %0 : i1 to i32
    %c0_i32_0 = arith.constant 0 : i32
    %2 = arith.cmpi ne, %1, %c0_i32_0 : i32
    scf.if %2 {
      %c0_10 = arith.constant 0 : index
      %c0_11 = arith.constant 0 : index
      %12 = vector.load %arg5[%c0_10, %c0_11] : memref<1x96xf32, #tpu.memory_space<vmem>>, vector<1x96xf32>
      %13 = vector.shape_cast %12 : vector<1x96xf32> to vector<1x96xf32>
      %14 = vector.broadcast %13 : vector<1x96xf32> to vector<16x96xf32>
      %c0_12 = arith.constant 0 : index
      %c0_13 = arith.constant 0 : index
      %15 = vector.load %arg7[%c0_12, %c0_13] : memref<16x96xf32, #tpu.memory_space<vmem>>, vector<16x96xf32>
      tpu.vector_store %arg7[%c0_12, %c0_13], %14 {strides = array<i32>} : memref<16x96xf32, #tpu.memory_space<vmem>>, vector<16x96xf32>,
    } else {
    }
    %c0 = arith.constant 0 : index
    %c0_1 = arith.constant 0 : index
    %3 = vector.load %arg7[%c0, %c0_1] : memref<16x96xf32, #tpu.memory_space<vmem>>, vector<16x96xf32>
    %c0_2 = arith.constant 0 : index
    %c0_3 = arith.constant 0 : index
    %4 = vector.load %arg3[%c0_2, %c0_3] : memref<16x32xbf16, #tpu.memory_space<vmem>>, vector<16x32xbf16>
    %c0_4 = arith.constant 0 : index
    %c0_5 = arith.constant 0 : index
    %5 = vector.load %arg4[%c0_4, %c0_5] : memref<32x96xbf16, #tpu.memory_space<vmem>>, vector<32x96xbf16>
    %cst = arith.constant dense<0.000000e+00> : vector<16x96xf32>
    %6 = tpu.matmul %4, %5, %cst {dimension_numbers = #tpu.dot_dimension_numbers<[1], [0], [0], [1], [0, 0, 1, 1], [], []>} : vector<16x32xbf16>, vector<32x96xbf16>, vector<16x96xf32> -> vector<16x96xf32>
    %7 = arith.addf %3, %6 : vector<16x96xf32>
    %c0_6 = arith.constant 0 : index
    %c0_7 = arith.constant 0 : index
    %8 = vector.load %arg7[%c0_6, %c0_7] : memref<16x96xf32, #tpu.memory_space<vmem>>, vector<16x96xf32>
    tpu.vector_store %arg7[%c0_6, %c0_7], %7 {strides = array<i32>} : memref<16x96xf32, #tpu.memory_space<vmem>>, vector<16x96xf32>,
    %c0_i32_8 = arith.constant 0 : i32
    %9 = arith.cmpi eq, %arg2, %c0_i32_8 : i32
    %10 = arith.extui %9 : i1 to i32
    %c0_i32_9 = arith.constant 0 : i32
    %11 = arith.cmpi ne, %10, %c0_i32_9 : i32
    scf.if %11 {
      %c0_10 = arith.constant 0 : index
      %c0_11 = arith.constant 0 : index
      %12 = vector.load %arg7[%c0_10, %c0_11] : memref<16x96xf32, #tpu.memory_space<vmem>>, vector<16x96xf32>
      %13 = arith.truncf %12 : vector<16x96xf32> to vector<16x96xbf16>
      %c0_12 = arith.constant 0 : index
      %c0_13 = arith.constant 0 : index
      %14 = vector.load %arg6[%c0_12, %c0_13] : memref<16x96xbf16, #tpu.memory_space<vmem>>, vector<16x96xbf16>
      tpu.vector_store %arg6[%c0_12, %c0_13], %13 {strides = array<i32>} : memref<16x96xbf16, #tpu.memory_space<vmem>>, vector<16x96xbf16>,
    } else {
    }
    return
  }
  func.func @transform_0(%arg0: i32, %arg1: i32, %arg2: i32) -> (i32, i32) {
    %c0_i32 = arith.constant 0 : i32
    return %arg0, %arg2 : i32, i32
  }
  func.func @transform_1(%arg0: i32, %arg1: i32, %arg2: i32) -> (i32, i32) {
    %c0_i32 = arith.constant 0 : i32
    return %arg2, %arg1 : i32, i32
  }
  func.func @transform_2(%arg0: i32, %arg1: i32, %arg2: i32) -> (i32, i32) {
    %c0_i32 = arith.constant 0 : i32
    %c0_i32_0 = arith.constant 0 : i32
    return %c0_i32, %arg1 : i32, i32
  }
  func.func @transform_3(%arg0: i32, %arg1: i32, %arg2: i32) -> (i32, i32) {
    %c0_i32 = arith.constant 0 : i32
    return %arg0, %arg1 : i32, i32
  }
}

module attributes {stable_mosaic.version = 11 : i64} {
  func.func @flash_attn_kernel(%arg0: i32, %arg1: i32, %arg2: i32, %arg3: memref<1x8x8xbf16, #tpu.memory_space<vmem>>, %arg4: memref<1x8x8xbf16, #tpu.memory_space<vmem>>, %arg5: memref<1x8x8xbf16, #tpu.memory_space<vmem>>, %arg6: memref<1x8x8xbf16, #tpu.memory_space<vmem>>, %arg7: memref<8x1xf32, #tpu.memory_space<vmem>>, %arg8: memref<8x1xf32, #tpu.memory_space<vmem>>, %arg9: memref<8x8xf32, #tpu.memory_space<vmem>>) attributes {dimension_semantics = [#tpu.dimension_semantics<parallel>, #tpu.dimension_semantics<parallel>, #tpu.dimension_semantics<arbitrary>], iteration_bounds = array<i64: 8, 1, 1>, scalar_prefetch = 0 : i64, scratch_operands = 3 : i64, tpu.core_type = #tpu.core_type<tc>, window_params = [{transform_indices = @transform_0, window_bounds = array<i64: 1, 8, 8>}, {transform_indices = @transform_1, window_bounds = array<i64: 1, 8, 8>}, {transform_indices = @transform_2, window_bounds = array<i64: 1, 8, 8>}, {transform_indices = @transform_3, window_bounds = array<i64: 1, 8, 8>}]} {
    %c0_i32 = arith.constant 0 : i32
    %0 = arith.cmpi eq, %arg2, %c0_i32 : i32
    %1 = arith.extui %0 : i1 to i32
    %c0_i32_0 = arith.constant 0 : i32
    %2 = arith.cmpi ne, %1, %c0_i32_0 : i32
    scf.if %2 {
      %cst_27 = arith.constant 0xFF800000 : f32
      %38 = vector.broadcast %cst_27 : f32 to vector<8x1xf32>
      %c0_28 = arith.constant 0 : index
      %c0_29 = arith.constant 0 : index
      %39 = vector.load %arg7[%c0_28, %c0_29] : memref<8x1xf32, #tpu.memory_space<vmem>>, vector<8x1xf32>
      tpu.vector_store %arg7[%c0_28, %c0_29], %38 {strides = array<i32>} : memref<8x1xf32, #tpu.memory_space<vmem>>, vector<8x1xf32>,
      %cst_30 = arith.constant 0.000000e+00 : f32
      %40 = vector.broadcast %cst_30 : f32 to vector<8x1xf32>
      %c0_31 = arith.constant 0 : index
      %c0_32 = arith.constant 0 : index
      %41 = vector.load %arg8[%c0_31, %c0_32] : memref<8x1xf32, #tpu.memory_space<vmem>>, vector<8x1xf32>
      tpu.vector_store %arg8[%c0_31, %c0_32], %40 {strides = array<i32>} : memref<8x1xf32, #tpu.memory_space<vmem>>, vector<8x1xf32>,
      %cst_33 = arith.constant 0.000000e+00 : f32
      %42 = vector.broadcast %cst_33 : f32 to vector<8x8xf32>
      %c0_34 = arith.constant 0 : index
      %c0_35 = arith.constant 0 : index
      %43 = vector.load %arg9[%c0_34, %c0_35] : memref<8x8xf32, #tpu.memory_space<vmem>>, vector<8x8xf32>
      tpu.vector_store %arg9[%c0_34, %c0_35], %42 {strides = array<i32>} : memref<8x8xf32, #tpu.memory_space<vmem>>, vector<8x8xf32>,
    } else {
    }
    %c0 = arith.constant 0 : index
    %c0_1 = arith.constant 0 : index
    %c0_2 = arith.constant 0 : index
    %3 = vector.load %arg3[%c0, %c0_1, %c0_2] : memref<1x8x8xbf16, #tpu.memory_space<vmem>>, vector<1x8x8xbf16>
    %4 = vector.shape_cast %3 : vector<1x8x8xbf16> to vector<8x8xbf16>
    %cst = arith.constant 3.535160e-01 : bf16
    %5 = vector.broadcast %cst : bf16 to vector<8x8xbf16>
    %6 = arith.mulf %4, %5 : vector<8x8xbf16>
    %c0_3 = arith.constant 0 : index
    %c0_4 = arith.constant 0 : index
    %c0_5 = arith.constant 0 : index
    %7 = vector.load %arg4[%c0_3, %c0_4, %c0_5] : memref<1x8x8xbf16, #tpu.memory_space<vmem>>, vector<1x8x8xbf16>
    %8 = vector.shape_cast %7 : vector<1x8x8xbf16> to vector<8x8xbf16>
    %cst_6 = arith.constant dense<0.000000e+00> : vector<8x8xf32>
    %9 = tpu.matmul %6, %8, %cst_6 {dimension_numbers = #tpu.dot_dimension_numbers<[1], [1], [0], [0], [0, 0, 1, 0], [], []>} : vector<8x8xbf16>, vector<8x8xbf16>, vector<8x8xf32> -> vector<8x8xf32>
    %c0_7 = arith.constant 0 : index
    %c0_8 = arith.constant 0 : index
    %10 = vector.load %arg7[%c0_7, %c0_8] : memref<8x1xf32, #tpu.memory_space<vmem>>, vector<8x1xf32>
    %cst_9 = arith.constant dense<0xFF800000> : vector<8xf32>
    %11 = vector.multi_reduction <maximumf>, %9, %cst_9 [1] : vector<8x8xf32> to vector<8xf32>
    %12 = vector.shape_cast %11 : vector<8xf32> to vector<8x1xf32>
    %13 = arith.maximumf %10, %12 : vector<8x1xf32>
    %14 = arith.subf %10, %13 : vector<8x1xf32>
    %15 = math.exp %14 : vector<8x1xf32>
    %16 = vector.broadcast %13 : vector<8x1xf32> to vector<8x8xf32>
    %17 = arith.subf %9, %16 : vector<8x8xf32>
    %18 = math.exp %17 : vector<8x8xf32>
    %c0_10 = arith.constant 0 : index
    %c0_11 = arith.constant 0 : index
    %19 = vector.load %arg8[%c0_10, %c0_11] : memref<8x1xf32, #tpu.memory_space<vmem>>, vector<8x1xf32>
    %20 = arith.mulf %15, %19 : vector<8x1xf32>
    %cst_12 = arith.constant dense<0.000000e+00> : vector<8xf32>
    %21 = vector.multi_reduction <add>, %18, %cst_12 [1] : vector<8x8xf32> to vector<8xf32>
    %22 = vector.shape_cast %21 : vector<8xf32> to vector<8x1xf32>
    %23 = arith.addf %20, %22 : vector<8x1xf32>
    %c0_13 = arith.constant 0 : index
    %c0_14 = arith.constant 0 : index
    %24 = vector.load %arg8[%c0_13, %c0_14] : memref<8x1xf32, #tpu.memory_space<vmem>>, vector<8x1xf32>
    tpu.vector_store %arg8[%c0_13, %c0_14], %23 {strides = array<i32>} : memref<8x1xf32, #tpu.memory_space<vmem>>, vector<8x1xf32>,
    %c0_15 = arith.constant 0 : index
    %c0_16 = arith.constant 0 : index
    %25 = vector.load %arg9[%c0_15, %c0_16] : memref<8x8xf32, #tpu.memory_space<vmem>>, vector<8x8xf32>
    %26 = vector.broadcast %15 : vector<8x1xf32> to vector<8x8xf32>
    %27 = arith.mulf %26, %25 : vector<8x8xf32>
    %28 = arith.truncf %18 : vector<8x8xf32> to vector<8x8xbf16>
    %c0_17 = arith.constant 0 : index
    %c0_18 = arith.constant 0 : index
    %c0_19 = arith.constant 0 : index
    %29 = vector.load %arg5[%c0_17, %c0_18, %c0_19] : memref<1x8x8xbf16, #tpu.memory_space<vmem>>, vector<1x8x8xbf16>
    %30 = vector.shape_cast %29 : vector<1x8x8xbf16> to vector<8x8xbf16>
    %cst_20 = arith.constant dense<0.000000e+00> : vector<8x8xf32>
    %31 = tpu.matmul %28, %30, %cst_20 {dimension_numbers = #tpu.dot_dimension_numbers<[1], [0], [0], [1], [0, 0, 1, 1], [], []>} : vector<8x8xbf16>, vector<8x8xbf16>, vector<8x8xf32> -> vector<8x8xf32>
    %32 = arith.addf %27, %31 : vector<8x8xf32>
    %c0_21 = arith.constant 0 : index
    %c0_22 = arith.constant 0 : index
    %33 = vector.load %arg9[%c0_21, %c0_22] : memref<8x8xf32, #tpu.memory_space<vmem>>, vector<8x8xf32>
    tpu.vector_store %arg9[%c0_21, %c0_22], %32 {strides = array<i32>} : memref<8x8xf32, #tpu.memory_space<vmem>>, vector<8x8xf32>,
    %c0_23 = arith.constant 0 : index
    %c0_24 = arith.constant 0 : index
    %34 = vector.load %arg7[%c0_23, %c0_24] : memref<8x1xf32, #tpu.memory_space<vmem>>, vector<8x1xf32>
    tpu.vector_store %arg7[%c0_23, %c0_24], %13 {strides = array<i32>} : memref<8x1xf32, #tpu.memory_space<vmem>>, vector<8x1xf32>,
    %c0_i32_25 = arith.constant 0 : i32
    %35 = arith.cmpi eq, %arg2, %c0_i32_25 : i32
    %36 = arith.extui %35 : i1 to i32
    %c0_i32_26 = arith.constant 0 : i32
    %37 = arith.cmpi ne, %36, %c0_i32_26 : i32
    scf.if %37 {
      %c0_27 = arith.constant 0 : index
      %c0_28 = arith.constant 0 : index
      %38 = vector.load %arg8[%c0_27, %c0_28] : memref<8x1xf32, #tpu.memory_space<vmem>>, vector<8x1xf32>
      %39 = tpu.reciprocal %38 {approx = true} : vector<8x1xf32> -> vector<8x1xf32>
      %c0_29 = arith.constant 0 : index
      %c0_30 = arith.constant 0 : index
      %40 = vector.load %arg9[%c0_29, %c0_30] : memref<8x8xf32, #tpu.memory_space<vmem>>, vector<8x8xf32>
      %41 = vector.broadcast %39 : vector<8x1xf32> to vector<8x8xf32>
      %42 = arith.mulf %40, %41 : vector<8x8xf32>
      %43 = arith.truncf %42 : vector<8x8xf32> to vector<8x8xbf16>
      %c0_31 = arith.constant 0 : index
      %c0_32 = arith.constant 0 : index
      %c0_33 = arith.constant 0 : index
      %44 = vector.load %arg6[%c0_31, %c0_32, %c0_33] : memref<1x8x8xbf16, #tpu.memory_space<vmem>>, vector<1x8x8xbf16>
      %45 = vector.shape_cast %44 : vector<1x8x8xbf16> to vector<8x8xbf16>
      %46 = vector.shape_cast %43 : vector<8x8xbf16> to vector<1x8x8xbf16>
      tpu.vector_store %arg6[%c0_31, %c0_32, %c0_33], %46 {strides = array<i32>} : memref<1x8x8xbf16, #tpu.memory_space<vmem>>, vector<1x8x8xbf16>,
    } else {
    }
    return
  }
  func.func @transform_0(%arg0: i32, %arg1: i32, %arg2: i32) -> (i32, i32, i32) {
    %c0_i32 = arith.constant 0 : i32
    %c0_i32_0 = arith.constant 0 : i32
    return %arg0, %arg1, %c0_i32 : i32, i32, i32
  }
  func.func @transform_1(%arg0: i32, %arg1: i32, %arg2: i32) -> (i32, i32, i32) {
    %c0_i32 = arith.constant 0 : i32
    %c0_i32_0 = arith.constant 0 : i32
    return %arg0, %arg2, %c0_i32 : i32, i32, i32
  }
  func.func @transform_2(%arg0: i32, %arg1: i32, %arg2: i32) -> (i32, i32, i32) {
    %c0_i32 = arith.constant 0 : i32
    %c0_i32_0 = arith.constant 0 : i32
    return %arg0, %arg2, %c0_i32 : i32, i32, i32
  }
  func.func @transform_3(%arg0: i32, %arg1: i32, %arg2: i32) -> (i32, i32, i32) {
    %c0_i32 = arith.constant 0 : i32
    %c0_i32_0 = arith.constant 0 : i32
    return %arg0, %arg1, %c0_i32 : i32, i32, i32
  }
}

module attributes {stable_mosaic.version = 11 : i64} {
  func.func @matmul_res_ln_kernel(%arg0: i32, %arg1: i32, %arg2: memref<16x32xbf16, #tpu.memory_space<vmem>>, %arg3: memref<32x32xbf16, #tpu.memory_space<vmem>>, %arg4: memref<1x32xf32, #tpu.memory_space<vmem>>, %arg5: memref<16x32xbf16, #tpu.memory_space<vmem>>, %arg6: memref<1x32xf32, #tpu.memory_space<vmem>>, %arg7: memref<1x32xf32, #tpu.memory_space<vmem>>, %arg8: memref<16x32xbf16, #tpu.memory_space<vmem>>, %arg9: memref<16x32xf32, #tpu.memory_space<vmem>>) attributes {dimension_semantics = [#tpu.dimension_semantics<parallel>, #tpu.dimension_semantics<arbitrary>], iteration_bounds = array<i64: 1, 1>, scalar_prefetch = 0 : i64, scratch_operands = 1 : i64, tpu.core_type = #tpu.core_type<tc>, window_params = [{transform_indices = @transform_0, window_bounds = array<i64: 16, 32>}, {transform_indices = @transform_1, window_bounds = array<i64: 32, 32>}, {pipeline_mode = #tpu.pipeline_mode<synchronous>, transform_indices = @transform_2, window_bounds = array<i64: 1, 32>}, {transform_indices = @transform_3, window_bounds = array<i64: 16, 32>}, {pipeline_mode = #tpu.pipeline_mode<synchronous>, transform_indices = @transform_4, window_bounds = array<i64: 1, 32>}, {pipeline_mode = #tpu.pipeline_mode<synchronous>, transform_indices = @transform_5, window_bounds = array<i64: 1, 32>}, {transform_indices = @transform_6, window_bounds = array<i64: 16, 32>}]} {
    %c0_i32 = arith.constant 0 : i32
    %0 = arith.cmpi eq, %arg1, %c0_i32 : i32
    %1 = arith.extui %0 : i1 to i32
    %c0_i32_0 = arith.constant 0 : i32
    %2 = arith.cmpi ne, %1, %c0_i32_0 : i32
    scf.if %2 {
      %c0_10 = arith.constant 0 : index
      %c0_11 = arith.constant 0 : index
      %12 = vector.load %arg4[%c0_10, %c0_11] : memref<1x32xf32, #tpu.memory_space<vmem>>, vector<1x32xf32>
      %13 = vector.shape_cast %12 : vector<1x32xf32> to vector<1x32xf32>
      %14 = vector.broadcast %13 : vector<1x32xf32> to vector<16x32xf32>
      %c0_12 = arith.constant 0 : index
      %c0_13 = arith.constant 0 : index
      %15 = vector.load %arg9[%c0_12, %c0_13] : memref<16x32xf32, #tpu.memory_space<vmem>>, vector<16x32xf32>
      tpu.vector_store %arg9[%c0_12, %c0_13], %14 {strides = array<i32>} : memref<16x32xf32, #tpu.memory_space<vmem>>, vector<16x32xf32>,
    } else {
    }
    %c0 = arith.constant 0 : index
    %c0_1 = arith.constant 0 : index
    %3 = vector.load %arg9[%c0, %c0_1] : memref<16x32xf32, #tpu.memory_space<vmem>>, vector<16x32xf32>
    %c0_2 = arith.constant 0 : index
    %c0_3 = arith.constant 0 : index
    %4 = vector.load %arg2[%c0_2, %c0_3] : memref<16x32xbf16, #tpu.memory_space<vmem>>, vector<16x32xbf16>
    %c0_4 = arith.constant 0 : index
    %c0_5 = arith.constant 0 : index
    %5 = vector.load %arg3[%c0_4, %c0_5] : memref<32x32xbf16, #tpu.memory_space<vmem>>, vector<32x32xbf16>
    %cst = arith.constant dense<0.000000e+00> : vector<16x32xf32>
    %6 = tpu.matmul %4, %5, %cst {dimension_numbers = #tpu.dot_dimension_numbers<[1], [0], [0], [1], [0, 0, 1, 1], [], []>} : vector<16x32xbf16>, vector<32x32xbf16>, vector<16x32xf32> -> vector<16x32xf32>
    %7 = arith.addf %3, %6 : vector<16x32xf32>
    %c0_6 = arith.constant 0 : index
    %c0_7 = arith.constant 0 : index
    %8 = vector.load %arg9[%c0_6, %c0_7] : memref<16x32xf32, #tpu.memory_space<vmem>>, vector<16x32xf32>
    tpu.vector_store %arg9[%c0_6, %c0_7], %7 {strides = array<i32>} : memref<16x32xf32, #tpu.memory_space<vmem>>, vector<16x32xf32>,
    %c0_i32_8 = arith.constant 0 : i32
    %9 = arith.cmpi eq, %arg1, %c0_i32_8 : i32
    %10 = arith.extui %9 : i1 to i32
    %c0_i32_9 = arith.constant 0 : i32
    %11 = arith.cmpi ne, %10, %c0_i32_9 : i32
    scf.if %11 {
      %c0_10 = arith.constant 0 : index
      %c0_11 = arith.constant 0 : index
      %12 = vector.load %arg9[%c0_10, %c0_11] : memref<16x32xf32, #tpu.memory_space<vmem>>, vector<16x32xf32>
      %c0_12 = arith.constant 0 : index
      %c0_13 = arith.constant 0 : index
      %13 = vector.load %arg5[%c0_12, %c0_13] : memref<16x32xbf16, #tpu.memory_space<vmem>>, vector<16x32xbf16>
      %14 = arith.extf %13 : vector<16x32xbf16> to vector<16x32xf32>
      %15 = arith.addf %12, %14 : vector<16x32xf32>
      %cst_14 = arith.constant dense<0.000000e+00> : vector<16xf32>
      %16 = vector.multi_reduction <add>, %15, %cst_14 [1] : vector<16x32xf32> to vector<16xf32>
      %17 = vector.shape_cast %16 : vector<16xf32> to vector<16x1xf32>
      %cst_15 = arith.constant 3.200000e+01 : f32
      %18 = vector.broadcast %cst_15 : f32 to vector<16x1xf32>
      %19 = arith.divf %17, %18 : vector<16x1xf32>
      %20 = vector.broadcast %19 : vector<16x1xf32> to vector<16x32xf32>
      %21 = arith.subf %15, %20 : vector<16x32xf32>
      %22 = arith.mulf %21, %21 : vector<16x32xf32>
      %cst_16 = arith.constant dense<0.000000e+00> : vector<16xf32>
      %23 = vector.multi_reduction <add>, %22, %cst_16 [1] : vector<16x32xf32> to vector<16xf32>
      %24 = vector.shape_cast %23 : vector<16xf32> to vector<16x1xf32>
      %cst_17 = arith.constant 3.200000e+01 : f32
      %25 = vector.broadcast %cst_17 : f32 to vector<16x1xf32>
      %26 = arith.divf %24, %25 : vector<16x1xf32>
      %27 = vector.broadcast %19 : vector<16x1xf32> to vector<16x32xf32>
      %28 = arith.subf %15, %27 : vector<16x32xf32>
      %cst_18 = arith.constant 9.99999974E-6 : f32
      %29 = vector.broadcast %cst_18 : f32 to vector<16x1xf32>
      %30 = arith.addf %26, %29 : vector<16x1xf32>
      %31 = math.rsqrt %30 : vector<16x1xf32>
      %32 = vector.broadcast %31 : vector<16x1xf32> to vector<16x32xf32>
      %33 = arith.mulf %28, %32 : vector<16x32xf32>
      %c0_19 = arith.constant 0 : index
      %c0_20 = arith.constant 0 : index
      %34 = vector.load %arg6[%c0_19, %c0_20] : memref<1x32xf32, #tpu.memory_space<vmem>>, vector<1x32xf32>
      %35 = vector.broadcast %34 : vector<1x32xf32> to vector<16x32xf32>
      %36 = arith.mulf %33, %35 : vector<16x32xf32>
      %c0_21 = arith.constant 0 : index
      %c0_22 = arith.constant 0 : index
      %37 = vector.load %arg7[%c0_21, %c0_22] : memref<1x32xf32, #tpu.memory_space<vmem>>, vector<1x32xf32>
      %38 = vector.broadcast %37 : vector<1x32xf32> to vector<16x32xf32>
      %39 = arith.addf %36, %38 : vector<16x32xf32>
      %40 = arith.truncf %39 : vector<16x32xf32> to vector<16x32xbf16>
      %c0_23 = arith.constant 0 : index
      %c0_24 = arith.constant 0 : index
      %41 = vector.load %arg8[%c0_23, %c0_24] : memref<16x32xbf16, #tpu.memory_space<vmem>>, vector<16x32xbf16>
      tpu.vector_store %arg8[%c0_23, %c0_24], %40 {strides = array<i32>} : memref<16x32xbf16, #tpu.memory_space<vmem>>, vector<16x32xbf16>,
    } else {
    }
    return
  }
  func.func @transform_0(%arg0: i32, %arg1: i32) -> (i32, i32) {
    %c0_i32 = arith.constant 0 : i32
    return %arg0, %arg1 : i32, i32
  }
  func.func @transform_1(%arg0: i32, %arg1: i32) -> (i32, i32) {
    %c0_i32 = arith.constant 0 : i32
    %c0_i32_0 = arith.constant 0 : i32
    return %arg1, %c0_i32 : i32, i32
  }
  func.func @transform_2(%arg0: i32, %arg1: i32) -> (i32, i32) {
    %c0_i32 = arith.constant 0 : i32
    %c0_i32_0 = arith.constant 0 : i32
    %c0_i32_1 = arith.constant 0 : i32
    return %c0_i32, %c0_i32_0 : i32, i32
  }
  func.func @transform_3(%arg0: i32, %arg1: i32) -> (i32, i32) {
    %c0_i32 = arith.constant 0 : i32
    %c0_i32_0 = arith.constant 0 : i32
    return %arg0, %c0_i32 : i32, i32
  }
  func.func @transform_4(%arg0: i32, %arg1: i32) -> (i32, i32) {
    %c0_i32 = arith.constant 0 : i32
    %c0_i32_0 = arith.constant 0 : i32
    %c0_i32_1 = arith.constant 0 : i32
    return %c0_i32, %c0_i32_0 : i32, i32
  }
  func.func @transform_5(%arg0: i32, %arg1: i32) -> (i32, i32) {
    %c0_i32 = arith.constant 0 : i32
    %c0_i32_0 = arith.constant 0 : i32
    %c0_i32_1 = arith.constant 0 : i32
    return %c0_i32, %c0_i32_0 : i32, i32
  }
  func.func @transform_6(%arg0: i32, %arg1: i32) -> (i32, i32) {
    %c0_i32 = arith.constant 0 : i32
    %c0_i32_0 = arith.constant 0 : i32
    return %arg0, %c0_i32 : i32, i32
  }
}

module attributes {stable_mosaic.version = 11 : i64} {
  func.func @matmul_kernel(%arg0: i32, %arg1: i32, %arg2: i32, %arg3: memref<16x32xbf16, #tpu.memory_space<vmem>>, %arg4: memref<32x32xbf16, #tpu.memory_space<vmem>>, %arg5: memref<1x32xf32, #tpu.memory_space<vmem>>, %arg6: memref<16x32xbf16, #tpu.memory_space<vmem>>, %arg7: memref<16x32xf32, #tpu.memory_space<vmem>>) attributes {dimension_semantics = [#tpu.dimension_semantics<parallel>, #tpu.dimension_semantics<parallel>, #tpu.dimension_semantics<arbitrary>], iteration_bounds = array<i64: 1, 1, 1>, scalar_prefetch = 0 : i64, scratch_operands = 1 : i64, tpu.core_type = #tpu.core_type<tc>, window_params = [{transform_indices = @transform_0, window_bounds = array<i64: 16, 32>}, {transform_indices = @transform_1, window_bounds = array<i64: 32, 32>}, {transform_indices = @transform_2, window_bounds = array<i64: 1, 32>}, {transform_indices = @transform_3, window_bounds = array<i64: 16, 32>}]} {
    %c0_i32 = arith.constant 0 : i32
    %0 = arith.cmpi eq, %arg2, %c0_i32 : i32
    %1 = arith.extui %0 : i1 to i32
    %c0_i32_0 = arith.constant 0 : i32
    %2 = arith.cmpi ne, %1, %c0_i32_0 : i32
    scf.if %2 {
      %c0_10 = arith.constant 0 : index
      %c0_11 = arith.constant 0 : index
      %12 = vector.load %arg5[%c0_10, %c0_11] : memref<1x32xf32, #tpu.memory_space<vmem>>, vector<1x32xf32>
      %13 = vector.shape_cast %12 : vector<1x32xf32> to vector<1x32xf32>
      %14 = vector.broadcast %13 : vector<1x32xf32> to vector<16x32xf32>
      %c0_12 = arith.constant 0 : index
      %c0_13 = arith.constant 0 : index
      %15 = vector.load %arg7[%c0_12, %c0_13] : memref<16x32xf32, #tpu.memory_space<vmem>>, vector<16x32xf32>
      tpu.vector_store %arg7[%c0_12, %c0_13], %14 {strides = array<i32>} : memref<16x32xf32, #tpu.memory_space<vmem>>, vector<16x32xf32>,
    } else {
    }
    %c0 = arith.constant 0 : index
    %c0_1 = arith.constant 0 : index
    %3 = vector.load %arg7[%c0, %c0_1] : memref<16x32xf32, #tpu.memory_space<vmem>>, vector<16x32xf32>
    %c0_2 = arith.constant 0 : index
    %c0_3 = arith.constant 0 : index
    %4 = vector.load %arg3[%c0_2, %c0_3] : memref<16x32xbf16, #tpu.memory_space<vmem>>, vector<16x32xbf16>
    %c0_4 = arith.constant 0 : index
    %c0_5 = arith.constant 0 : index
    %5 = vector.load %arg4[%c0_4, %c0_5] : memref<32x32xbf16, #tpu.memory_space<vmem>>, vector<32x32xbf16>
    %cst = arith.constant dense<0.000000e+00> : vector<16x32xf32>
    %6 = tpu.matmul %4, %5, %cst {dimension_numbers = #tpu.dot_dimension_numbers<[1], [0], [0], [1], [0, 0, 1, 1], [], []>} : vector<16x32xbf16>, vector<32x32xbf16>, vector<16x32xf32> -> vector<16x32xf32>
    %7 = arith.addf %3, %6 : vector<16x32xf32>
    %c0_6 = arith.constant 0 : index
    %c0_7 = arith.constant 0 : index
    %8 = vector.load %arg7[%c0_6, %c0_7] : memref<16x32xf32, #tpu.memory_space<vmem>>, vector<16x32xf32>
    tpu.vector_store %arg7[%c0_6, %c0_7], %7 {strides = array<i32>} : memref<16x32xf32, #tpu.memory_space<vmem>>, vector<16x32xf32>,
    %c0_i32_8 = arith.constant 0 : i32
    %9 = arith.cmpi eq, %arg2, %c0_i32_8 : i32
    %10 = arith.extui %9 : i1 to i32
    %c0_i32_9 = arith.constant 0 : i32
    %11 = arith.cmpi ne, %10, %c0_i32_9 : i32
    scf.if %11 {
      %c0_10 = arith.constant 0 : index
      %c0_11 = arith.constant 0 : index
      %12 = vector.load %arg7[%c0_10, %c0_11] : memref<16x32xf32, #tpu.memory_space<vmem>>, vector<16x32xf32>
      %13 = arith.truncf %12 : vector<16x32xf32> to vector<16x32xbf16>
      %c0_12 = arith.constant 0 : index
      %c0_13 = arith.constant 0 : index
      %14 = vector.load %arg6[%c0_12, %c0_13] : memref<16x32xbf16, #tpu.memory_space<vmem>>, vector<16x32xbf16>
      tpu.vector_store %arg6[%c0_12, %c0_13], %13 {strides = array<i32>} : memref<16x32xbf16, #tpu.memory_space<vmem>>, vector<16x32xbf16>,
    } else {
    }
    return
  }
  func.func @transform_0(%arg0: i32, %arg1: i32, %arg2: i32) -> (i32, i32) {
    %c0_i32 = arith.constant 0 : i32
    return %arg0, %arg2 : i32, i32
  }
  func.func @transform_1(%arg0: i32, %arg1: i32, %arg2: i32) -> (i32, i32) {
    %c0_i32 = arith.constant 0 : i32
    return %arg2, %arg1 : i32, i32
  }
  func.func @transform_2(%arg0: i32, %arg1: i32, %arg2: i32) -> (i32, i32) {
    %c0_i32 = arith.constant 0 : i32
    %c0_i32_0 = arith.constant 0 : i32
    return %c0_i32, %arg1 : i32, i32
  }
  func.func @transform_3(%arg0: i32, %arg1: i32, %arg2: i32) -> (i32, i32) {
    %c0_i32 = arith.constant 0 : i32
    return %arg0, %arg1 : i32, i32
  }
}

module attributes {stable_mosaic.version = 11 : i64} {
  func.func @matmul_kernel(%arg0: i32, %arg1: i32, %arg2: i32, %arg3: memref<16x32xbf16, #tpu.memory_space<vmem>>, %arg4: memref<32x64xbf16, #tpu.memory_space<vmem>>, %arg5: memref<1x64xf32, #tpu.memory_space<vmem>>, %arg6: memref<16x64xbf16, #tpu.memory_space<vmem>>, %arg7: memref<16x64xf32, #tpu.memory_space<vmem>>) attributes {dimension_semantics = [#tpu.dimension_semantics<parallel>, #tpu.dimension_semantics<parallel>, #tpu.dimension_semantics<arbitrary>], iteration_bounds = array<i64: 1, 1, 1>, scalar_prefetch = 0 : i64, scratch_operands = 1 : i64, tpu.core_type = #tpu.core_type<tc>, window_params = [{transform_indices = @transform_0, window_bounds = array<i64: 16, 32>}, {transform_indices = @transform_1, window_bounds = array<i64: 32, 64>}, {transform_indices = @transform_2, window_bounds = array<i64: 1, 64>}, {transform_indices = @transform_3, window_bounds = array<i64: 16, 64>}]} {
    %c0_i32 = arith.constant 0 : i32
    %0 = arith.cmpi eq, %arg2, %c0_i32 : i32
    %1 = arith.extui %0 : i1 to i32
    %c0_i32_0 = arith.constant 0 : i32
    %2 = arith.cmpi ne, %1, %c0_i32_0 : i32
    scf.if %2 {
      %c0_10 = arith.constant 0 : index
      %c0_11 = arith.constant 0 : index
      %12 = vector.load %arg5[%c0_10, %c0_11] : memref<1x64xf32, #tpu.memory_space<vmem>>, vector<1x64xf32>
      %13 = vector.shape_cast %12 : vector<1x64xf32> to vector<1x64xf32>
      %14 = vector.broadcast %13 : vector<1x64xf32> to vector<16x64xf32>
      %c0_12 = arith.constant 0 : index
      %c0_13 = arith.constant 0 : index
      %15 = vector.load %arg7[%c0_12, %c0_13] : memref<16x64xf32, #tpu.memory_space<vmem>>, vector<16x64xf32>
      tpu.vector_store %arg7[%c0_12, %c0_13], %14 {strides = array<i32>} : memref<16x64xf32, #tpu.memory_space<vmem>>, vector<16x64xf32>,
    } else {
    }
    %c0 = arith.constant 0 : index
    %c0_1 = arith.constant 0 : index
    %3 = vector.load %arg7[%c0, %c0_1] : memref<16x64xf32, #tpu.memory_space<vmem>>, vector<16x64xf32>
    %c0_2 = arith.constant 0 : index
    %c0_3 = arith.constant 0 : index
    %4 = vector.load %arg3[%c0_2, %c0_3] : memref<16x32xbf16, #tpu.memory_space<vmem>>, vector<16x32xbf16>
    %c0_4 = arith.constant 0 : index
    %c0_5 = arith.constant 0 : index
    %5 = vector.load %arg4[%c0_4, %c0_5] : memref<32x64xbf16, #tpu.memory_space<vmem>>, vector<32x64xbf16>
    %cst = arith.constant dense<0.000000e+00> : vector<16x64xf32>
    %6 = tpu.matmul %4, %5, %cst {dimension_numbers = #tpu.dot_dimension_numbers<[1], [0], [0], [1], [0, 0, 1, 1], [], []>} : vector<16x32xbf16>, vector<32x64xbf16>, vector<16x64xf32> -> vector<16x64xf32>
    %7 = arith.addf %3, %6 : vector<16x64xf32>
    %c0_6 = arith.constant 0 : index
    %c0_7 = arith.constant 0 : index
    %8 = vector.load %arg7[%c0_6, %c0_7] : memref<16x64xf32, #tpu.memory_space<vmem>>, vector<16x64xf32>
    tpu.vector_store %arg7[%c0_6, %c0_7], %7 {strides = array<i32>} : memref<16x64xf32, #tpu.memory_space<vmem>>, vector<16x64xf32>,
    %c0_i32_8 = arith.constant 0 : i32
    %9 = arith.cmpi eq, %arg2, %c0_i32_8 : i32
    %10 = arith.extui %9 : i1 to i32
    %c0_i32_9 = arith.constant 0 : i32
    %11 = arith.cmpi ne, %10, %c0_i32_9 : i32
    scf.if %11 {
      %c0_10 = arith.constant 0 : index
      %c0_11 = arith.constant 0 : index
      %12 = vector.load %arg7[%c0_10, %c0_11] : memref<16x64xf32, #tpu.memory_space<vmem>>, vector<16x64xf32>
      %13 = arith.truncf %12 : vector<16x64xf32> to vector<16x64xbf16>
      %c0_12 = arith.constant 0 : index
      %c0_13 = arith.constant 0 : index
      %14 = vector.load %arg6[%c0_12, %c0_13] : memref<16x64xbf16, #tpu.memory_space<vmem>>, vector<16x64xbf16>
      tpu.vector_store %arg6[%c0_12, %c0_13], %13 {strides = array<i32>} : memref<16x64xbf16, #tpu.memory_space<vmem>>, vector<16x64xbf16>,
    } else {
    }
    return
  }
  func.func @transform_0(%arg0: i32, %arg1: i32, %arg2: i32) -> (i32, i32) {
    %c0_i32 = arith.constant 0 : i32
    return %arg0, %arg2 : i32, i32
  }
  func.func @transform_1(%arg0: i32, %arg1: i32, %arg2: i32) -> (i32, i32) {
    %c0_i32 = arith.constant 0 : i32
    return %arg2, %arg1 : i32, i32
  }
  func.func @transform_2(%arg0: i32, %arg1: i32, %arg2: i32) -> (i32, i32) {
    %c0_i32 = arith.constant 0 : i32
    %c0_i32_0 = arith.constant 0 : i32
    return %c0_i32, %arg1 : i32, i32
  }
  func.func @transform_3(%arg0: i32, %arg1: i32, %arg2: i32) -> (i32, i32) {
    %c0_i32 = arith.constant 0 : i32
    return %arg0, %arg1 : i32, i32
  }
}

module attributes {stable_mosaic.version = 11 : i64} {
  func.func @layernorm_kernel(%arg0: i32, %arg1: memref<16x32xbf16, #tpu.memory_space<vmem>>, %arg2: memref<1x32xf32, #tpu.memory_space<vmem>>, %arg3: memref<1x32xf32, #tpu.memory_space<vmem>>, %arg4: memref<16x32xbf16, #tpu.memory_space<vmem>>) attributes {dimension_semantics = [#tpu.dimension_semantics<parallel>], iteration_bounds = array<i64: 1>, scalar_prefetch = 0 : i64, scratch_operands = 0 : i64, tpu.core_type = #tpu.core_type<tc>, window_params = [{transform_indices = @transform_0, window_bounds = array<i64: 16, 32>}, {pipeline_mode = #tpu.pipeline_mode<synchronous>, transform_indices = @transform_1, window_bounds = array<i64: 1, 32>}, {pipeline_mode = #tpu.pipeline_mode<synchronous>, transform_indices = @transform_2, window_bounds = array<i64: 1, 32>}, {transform_indices = @transform_3, window_bounds = array<i64: 16, 32>}]} {
    %c0 = arith.constant 0 : index
    %c0_0 = arith.constant 0 : index
    %0 = vector.load %arg1[%c0, %c0_0] : memref<16x32xbf16, #tpu.memory_space<vmem>>, vector<16x32xbf16>
    %1 = arith.extf %0 : vector<16x32xbf16> to vector<16x32xf32>
    %cst = arith.constant dense<0.000000e+00> : vector<16xf32>
    %2 = vector.multi_reduction <add>, %1, %cst [1] : vector<16x32xf32> to vector<16xf32>
    %3 = vector.shape_cast %2 : vector<16xf32> to vector<16x1xf32>
    %cst_1 = arith.constant 3.200000e+01 : f32
    %4 = vector.broadcast %cst_1 : f32 to vector<16x1xf32>
    %5 = arith.divf %3, %4 : vector<16x1xf32>
    %6 = vector.broadcast %5 : vector<16x1xf32> to vector<16x32xf32>
    %7 = arith.subf %1, %6 : vector<16x32xf32>
    %8 = arith.mulf %7, %7 : vector<16x32xf32>
    %cst_2 = arith.constant dense<0.000000e+00> : vector<16xf32>
    %9 = vector.multi_reduction <add>, %8, %cst_2 [1] : vector<16x32xf32> to vector<16xf32>
    %10 = vector.shape_cast %9 : vector<16xf32> to vector<16x1xf32>
    %cst_3 = arith.constant 3.200000e+01 : f32
    %11 = vector.broadcast %cst_3 : f32 to vector<16x1xf32>
    %12 = arith.divf %10, %11 : vector<16x1xf32>
    %13 = vector.broadcast %5 : vector<16x1xf32> to vector<16x32xf32>
    %14 = arith.subf %1, %13 : vector<16x32xf32>
    %cst_4 = arith.constant 9.99999974E-6 : f32
    %15 = vector.broadcast %cst_4 : f32 to vector<16x1xf32>
    %16 = arith.addf %12, %15 : vector<16x1xf32>
    %17 = math.rsqrt %16 : vector<16x1xf32>
    %18 = vector.broadcast %17 : vector<16x1xf32> to vector<16x32xf32>
    %19 = arith.mulf %14, %18 : vector<16x32xf32>
    %c0_5 = arith.constant 0 : index
    %c0_6 = arith.constant 0 : index
    %20 = vector.load %arg2[%c0_5, %c0_6] : memref<1x32xf32, #tpu.memory_space<vmem>>, vector<1x32xf32>
    %21 = vector.broadcast %20 : vector<1x32xf32> to vector<16x32xf32>
    %22 = arith.mulf %19, %21 : vector<16x32xf32>
    %c0_7 = arith.constant 0 : index
    %c0_8 = arith.constant 0 : index
    %23 = vector.load %arg3[%c0_7, %c0_8] : memref<1x32xf32, #tpu.memory_space<vmem>>, vector<1x32xf32>
    %24 = vector.broadcast %23 : vector<1x32xf32> to vector<16x32xf32>
    %25 = arith.addf %22, %24 : vector<16x32xf32>
    %26 = arith.truncf %25 : vector<16x32xf32> to vector<16x32xbf16>
    %c0_9 = arith.constant 0 : index
    %c0_10 = arith.constant 0 : index
    %27 = vector.load %arg4[%c0_9, %c0_10] : memref<16x32xbf16, #tpu.memory_space<vmem>>, vector<16x32xbf16>
    tpu.vector_store %arg4[%c0_9, %c0_10], %26 {strides = array<i32>} : memref<16x32xbf16, #tpu.memory_space<vmem>>, vector<16x32xbf16>,
    return
  }
  func.func @transform_0(%arg0: i32) -> (i32, i32) {
    %c0_i32 = arith.constant 0 : i32
    %c0_i32_0 = arith.constant 0 : i32
    return %arg0, %c0_i32 : i32, i32
  }
  func.func @transform_1(%arg0: i32) -> (i32, i32) {
    %c0_i32 = arith.constant 0 : i32
    %c0_i32_0 = arith.constant 0 : i32
    %c0_i32_1 = arith.constant 0 : i32
    return %c0_i32, %c0_i32_0 : i32, i32
  }
  func.func @transform_2(%arg0: i32) -> (i32, i32) {
    %c0_i32 = arith.constant 0 : i32
    %c0_i32_0 = arith.constant 0 : i32
    %c0_i32_1 = arith.constant 0 : i32
    return %c0_i32, %c0_i32_0 : i32, i32
  }
  func.func @transform_3(%arg0: i32) -> (i32, i32) {
    %c0_i32 = arith.constant 0 : i32
    %c0_i32_0 = arith.constant 0 : i32
    return %arg0, %c0_i32 : i32, i32
  }
}

module attributes {stable_mosaic.version = 11 : i64} {
  func.func @matmul_kernel(%arg0: i32, %arg1: i32, %arg2: i32, %arg3: memref<16x32xbf16, #tpu.memory_space<vmem>>, %arg4: memref<32x64xbf16, #tpu.memory_space<vmem>>, %arg5: memref<1x64xf32, #tpu.memory_space<vmem>>, %arg6: memref<16x64xbf16, #tpu.memory_space<vmem>>, %arg7: memref<16x64xf32, #tpu.memory_space<vmem>>) attributes {dimension_semantics = [#tpu.dimension_semantics<parallel>, #tpu.dimension_semantics<parallel>, #tpu.dimension_semantics<arbitrary>], iteration_bounds = array<i64: 1, 1, 1>, scalar_prefetch = 0 : i64, scratch_operands = 1 : i64, tpu.core_type = #tpu.core_type<tc>, window_params = [{transform_indices = @transform_0, window_bounds = array<i64: 16, 32>}, {transform_indices = @transform_1, window_bounds = array<i64: 32, 64>}, {transform_indices = @transform_2, window_bounds = array<i64: 1, 64>}, {transform_indices = @transform_3, window_bounds = array<i64: 16, 64>}]} {
    %c0_i32 = arith.constant 0 : i32
    %0 = arith.cmpi eq, %arg2, %c0_i32 : i32
    %1 = arith.extui %0 : i1 to i32
    %c0_i32_0 = arith.constant 0 : i32
    %2 = arith.cmpi ne, %1, %c0_i32_0 : i32
    scf.if %2 {
      %c0_10 = arith.constant 0 : index
      %c0_11 = arith.constant 0 : index
      %12 = vector.load %arg5[%c0_10, %c0_11] : memref<1x64xf32, #tpu.memory_space<vmem>>, vector<1x64xf32>
      %13 = vector.shape_cast %12 : vector<1x64xf32> to vector<1x64xf32>
      %14 = vector.broadcast %13 : vector<1x64xf32> to vector<16x64xf32>
      %c0_12 = arith.constant 0 : index
      %c0_13 = arith.constant 0 : index
      %15 = vector.load %arg7[%c0_12, %c0_13] : memref<16x64xf32, #tpu.memory_space<vmem>>, vector<16x64xf32>
      tpu.vector_store %arg7[%c0_12, %c0_13], %14 {strides = array<i32>} : memref<16x64xf32, #tpu.memory_space<vmem>>, vector<16x64xf32>,
    } else {
    }
    %c0 = arith.constant 0 : index
    %c0_1 = arith.constant 0 : index
    %3 = vector.load %arg7[%c0, %c0_1] : memref<16x64xf32, #tpu.memory_space<vmem>>, vector<16x64xf32>
    %c0_2 = arith.constant 0 : index
    %c0_3 = arith.constant 0 : index
    %4 = vector.load %arg3[%c0_2, %c0_3] : memref<16x32xbf16, #tpu.memory_space<vmem>>, vector<16x32xbf16>
    %c0_4 = arith.constant 0 : index
    %c0_5 = arith.constant 0 : index
    %5 = vector.load %arg4[%c0_4, %c0_5] : memref<32x64xbf16, #tpu.memory_space<vmem>>, vector<32x64xbf16>
    %cst = arith.constant dense<0.000000e+00> : vector<16x64xf32>
    %6 = tpu.matmul %4, %5, %cst {dimension_numbers = #tpu.dot_dimension_numbers<[1], [0], [0], [1], [0, 0, 1, 1], [], []>} : vector<16x32xbf16>, vector<32x64xbf16>, vector<16x64xf32> -> vector<16x64xf32>
    %7 = arith.addf %3, %6 : vector<16x64xf32>
    %c0_6 = arith.constant 0 : index
    %c0_7 = arith.constant 0 : index
    %8 = vector.load %arg7[%c0_6, %c0_7] : memref<16x64xf32, #tpu.memory_space<vmem>>, vector<16x64xf32>
    tpu.vector_store %arg7[%c0_6, %c0_7], %7 {strides = array<i32>} : memref<16x64xf32, #tpu.memory_space<vmem>>, vector<16x64xf32>,
    %c0_i32_8 = arith.constant 0 : i32
    %9 = arith.cmpi eq, %arg2, %c0_i32_8 : i32
    %10 = arith.extui %9 : i1 to i32
    %c0_i32_9 = arith.constant 0 : i32
    %11 = arith.cmpi ne, %10, %c0_i32_9 : i32
    scf.if %11 {
      %c0_10 = arith.constant 0 : index
      %c0_11 = arith.constant 0 : index
      %12 = vector.load %arg7[%c0_10, %c0_11] : memref<16x64xf32, #tpu.memory_space<vmem>>, vector<16x64xf32>
      %cst_12 = arith.constant 5.000000e-01 : f32
      %13 = vector.broadcast %cst_12 : f32 to vector<16x64xf32>
      %14 = arith.mulf %13, %12 : vector<16x64xf32>
      %cst_13 = arith.constant 4.471500e-02 : f32
      %15 = vector.broadcast %cst_13 : f32 to vector<16x64xf32>
      %16 = arith.mulf %15, %12 : vector<16x64xf32>
      %17 = arith.mulf %16, %12 : vector<16x64xf32>
      %18 = arith.mulf %17, %12 : vector<16x64xf32>
      %19 = arith.addf %12, %18 : vector<16x64xf32>
      %cst_14 = arith.constant 0.797884583 : f32
      %20 = vector.broadcast %cst_14 : f32 to vector<16x64xf32>
      %21 = arith.mulf %20, %19 : vector<16x64xf32>
      %22 = math.tanh %21 : vector<16x64xf32>
      %cst_15 = arith.constant 1.000000e+00 : f32
      %23 = vector.broadcast %cst_15 : f32 to vector<16x64xf32>
      %24 = arith.addf %23, %22 : vector<16x64xf32>
      %25 = arith.mulf %14, %24 : vector<16x64xf32>
      %26 = arith.truncf %25 : vector<16x64xf32> to vector<16x64xbf16>
      %c0_16 = arith.constant 0 : index
      %c0_17 = arith.constant 0 : index
      %27 = vector.load %arg6[%c0_16, %c0_17] : memref<16x64xbf16, #tpu.memory_space<vmem>>, vector<16x64xbf16>
      tpu.vector_store %arg6[%c0_16, %c0_17], %26 {strides = array<i32>} : memref<16x64xbf16, #tpu.memory_space<vmem>>, vector<16x64xbf16>,
    } else {
    }
    return
  }
  func.func @transform_0(%arg0: i32, %arg1: i32, %arg2: i32) -> (i32, i32) {
    %c0_i32 = arith.constant 0 : i32
    return %arg0, %arg2 : i32, i32
  }
  func.func @transform_1(%arg0: i32, %arg1: i32, %arg2: i32) -> (i32, i32) {
    %c0_i32 = arith.constant 0 : i32
    return %arg2, %arg1 : i32, i32
  }
  func.func @transform_2(%arg0: i32, %arg1: i32, %arg2: i32) -> (i32, i32) {
    %c0_i32 = arith.constant 0 : i32
    %c0_i32_0 = arith.constant 0 : i32
    return %c0_i32, %arg1 : i32, i32
  }
  func.func @transform_3(%arg0: i32, %arg1: i32, %arg2: i32) -> (i32, i32) {
    %c0_i32 = arith.constant 0 : i32
    return %arg0, %arg1 : i32, i32
  }
}

module attributes {stable_mosaic.version = 11 : i64} {
  func.func @matmul_res_ln_kernel(%arg0: i32, %arg1: i32, %arg2: memref<16x64xbf16, #tpu.memory_space<vmem>>, %arg3: memref<64x32xbf16, #tpu.memory_space<vmem>>, %arg4: memref<1x32xf32, #tpu.memory_space<vmem>>, %arg5: memref<16x32xbf16, #tpu.memory_space<vmem>>, %arg6: memref<1x32xf32, #tpu.memory_space<vmem>>, %arg7: memref<1x32xf32, #tpu.memory_space<vmem>>, %arg8: memref<16x32xbf16, #tpu.memory_space<vmem>>, %arg9: memref<16x32xf32, #tpu.memory_space<vmem>>) attributes {dimension_semantics = [#tpu.dimension_semantics<parallel>, #tpu.dimension_semantics<arbitrary>], iteration_bounds = array<i64: 1, 1>, scalar_prefetch = 0 : i64, scratch_operands = 1 : i64, tpu.core_type = #tpu.core_type<tc>, window_params = [{transform_indices = @transform_0, window_bounds = array<i64: 16, 64>}, {transform_indices = @transform_1, window_bounds = array<i64: 64, 32>}, {pipeline_mode = #tpu.pipeline_mode<synchronous>, transform_indices = @transform_2, window_bounds = array<i64: 1, 32>}, {transform_indices = @transform_3, window_bounds = array<i64: 16, 32>}, {pipeline_mode = #tpu.pipeline_mode<synchronous>, transform_indices = @transform_4, window_bounds = array<i64: 1, 32>}, {pipeline_mode = #tpu.pipeline_mode<synchronous>, transform_indices = @transform_5, window_bounds = array<i64: 1, 32>}, {transform_indices = @transform_6, window_bounds = array<i64: 16, 32>}]} {
    %c0_i32 = arith.constant 0 : i32
    %0 = arith.cmpi eq, %arg1, %c0_i32 : i32
    %1 = arith.extui %0 : i1 to i32
    %c0_i32_0 = arith.constant 0 : i32
    %2 = arith.cmpi ne, %1, %c0_i32_0 : i32
    scf.if %2 {
      %c0_10 = arith.constant 0 : index
      %c0_11 = arith.constant 0 : index
      %12 = vector.load %arg4[%c0_10, %c0_11] : memref<1x32xf32, #tpu.memory_space<vmem>>, vector<1x32xf32>
      %13 = vector.shape_cast %12 : vector<1x32xf32> to vector<1x32xf32>
      %14 = vector.broadcast %13 : vector<1x32xf32> to vector<16x32xf32>
      %c0_12 = arith.constant 0 : index
      %c0_13 = arith.constant 0 : index
      %15 = vector.load %arg9[%c0_12, %c0_13] : memref<16x32xf32, #tpu.memory_space<vmem>>, vector<16x32xf32>
      tpu.vector_store %arg9[%c0_12, %c0_13], %14 {strides = array<i32>} : memref<16x32xf32, #tpu.memory_space<vmem>>, vector<16x32xf32>,
    } else {
    }
    %c0 = arith.constant 0 : index
    %c0_1 = arith.constant 0 : index
    %3 = vector.load %arg9[%c0, %c0_1] : memref<16x32xf32, #tpu.memory_space<vmem>>, vector<16x32xf32>
    %c0_2 = arith.constant 0 : index
    %c0_3 = arith.constant 0 : index
    %4 = vector.load %arg2[%c0_2, %c0_3] : memref<16x64xbf16, #tpu.memory_space<vmem>>, vector<16x64xbf16>
    %c0_4 = arith.constant 0 : index
    %c0_5 = arith.constant 0 : index
    %5 = vector.load %arg3[%c0_4, %c0_5] : memref<64x32xbf16, #tpu.memory_space<vmem>>, vector<64x32xbf16>
    %cst = arith.constant dense<0.000000e+00> : vector<16x32xf32>
    %6 = tpu.matmul %4, %5, %cst {dimension_numbers = #tpu.dot_dimension_numbers<[1], [0], [0], [1], [0, 0, 1, 1], [], []>} : vector<16x64xbf16>, vector<64x32xbf16>, vector<16x32xf32> -> vector<16x32xf32>
    %7 = arith.addf %3, %6 : vector<16x32xf32>
    %c0_6 = arith.constant 0 : index
    %c0_7 = arith.constant 0 : index
    %8 = vector.load %arg9[%c0_6, %c0_7] : memref<16x32xf32, #tpu.memory_space<vmem>>, vector<16x32xf32>
    tpu.vector_store %arg9[%c0_6, %c0_7], %7 {strides = array<i32>} : memref<16x32xf32, #tpu.memory_space<vmem>>, vector<16x32xf32>,
    %c0_i32_8 = arith.constant 0 : i32
    %9 = arith.cmpi eq, %arg1, %c0_i32_8 : i32
    %10 = arith.extui %9 : i1 to i32
    %c0_i32_9 = arith.constant 0 : i32
    %11 = arith.cmpi ne, %10, %c0_i32_9 : i32
    scf.if %11 {
      %c0_10 = arith.constant 0 : index
      %c0_11 = arith.constant 0 : index
      %12 = vector.load %arg9[%c0_10, %c0_11] : memref<16x32xf32, #tpu.memory_space<vmem>>, vector<16x32xf32>
      %c0_12 = arith.constant 0 : index
      %c0_13 = arith.constant 0 : index
      %13 = vector.load %arg5[%c0_12, %c0_13] : memref<16x32xbf16, #tpu.memory_space<vmem>>, vector<16x32xbf16>
      %14 = arith.extf %13 : vector<16x32xbf16> to vector<16x32xf32>
      %15 = arith.addf %12, %14 : vector<16x32xf32>
      %cst_14 = arith.constant dense<0.000000e+00> : vector<16xf32>
      %16 = vector.multi_reduction <add>, %15, %cst_14 [1] : vector<16x32xf32> to vector<16xf32>
      %17 = vector.shape_cast %16 : vector<16xf32> to vector<16x1xf32>
      %cst_15 = arith.constant 3.200000e+01 : f32
      %18 = vector.broadcast %cst_15 : f32 to vector<16x1xf32>
      %19 = arith.divf %17, %18 : vector<16x1xf32>
      %20 = vector.broadcast %19 : vector<16x1xf32> to vector<16x32xf32>
      %21 = arith.subf %15, %20 : vector<16x32xf32>
      %22 = arith.mulf %21, %21 : vector<16x32xf32>
      %cst_16 = arith.constant dense<0.000000e+00> : vector<16xf32>
      %23 = vector.multi_reduction <add>, %22, %cst_16 [1] : vector<16x32xf32> to vector<16xf32>
      %24 = vector.shape_cast %23 : vector<16xf32> to vector<16x1xf32>
      %cst_17 = arith.constant 3.200000e+01 : f32
      %25 = vector.broadcast %cst_17 : f32 to vector<16x1xf32>
      %26 = arith.divf %24, %25 : vector<16x1xf32>
      %27 = vector.broadcast %19 : vector<16x1xf32> to vector<16x32xf32>
      %28 = arith.subf %15, %27 : vector<16x32xf32>
      %cst_18 = arith.constant 9.99999974E-6 : f32
      %29 = vector.broadcast %cst_18 : f32 to vector<16x1xf32>
      %30 = arith.addf %26, %29 : vector<16x1xf32>
      %31 = math.rsqrt %30 : vector<16x1xf32>
      %32 = vector.broadcast %31 : vector<16x1xf32> to vector<16x32xf32>
      %33 = arith.mulf %28, %32 : vector<16x32xf32>
      %c0_19 = arith.constant 0 : index
      %c0_20 = arith.constant 0 : index
      %34 = vector.load %arg6[%c0_19, %c0_20] : memref<1x32xf32, #tpu.memory_space<vmem>>, vector<1x32xf32>
      %35 = vector.broadcast %34 : vector<1x32xf32> to vector<16x32xf32>
      %36 = arith.mulf %33, %35 : vector<16x32xf32>
      %c0_21 = arith.constant 0 : index
      %c0_22 = arith.constant 0 : index
      %37 = vector.load %arg7[%c0_21, %c0_22] : memref<1x32xf32, #tpu.memory_space<vmem>>, vector<1x32xf32>
      %38 = vector.broadcast %37 : vector<1x32xf32> to vector<16x32xf32>
      %39 = arith.addf %36, %38 : vector<16x32xf32>
      %40 = arith.truncf %39 : vector<16x32xf32> to vector<16x32xbf16>
      %c0_23 = arith.constant 0 : index
      %c0_24 = arith.constant 0 : index
      %41 = vector.load %arg8[%c0_23, %c0_24] : memref<16x32xbf16, #tpu.memory_space<vmem>>, vector<16x32xbf16>
      tpu.vector_store %arg8[%c0_23, %c0_24], %40 {strides = array<i32>} : memref<16x32xbf16, #tpu.memory_space<vmem>>, vector<16x32xbf16>,
    } else {
    }
    return
  }
  func.func @transform_0(%arg0: i32, %arg1: i32) -> (i32, i32) {
    %c0_i32 = arith.constant 0 : i32
    return %arg0, %arg1 : i32, i32
  }
  func.func @transform_1(%arg0: i32, %arg1: i32) -> (i32, i32) {
    %c0_i32 = arith.constant 0 : i32
    %c0_i32_0 = arith.constant 0 : i32
    return %arg1, %c0_i32 : i32, i32
  }
  func.func @transform_2(%arg0: i32, %arg1: i32) -> (i32, i32) {
    %c0_i32 = arith.constant 0 : i32
    %c0_i32_0 = arith.constant 0 : i32
    %c0_i32_1 = arith.constant 0 : i32
    return %c0_i32, %c0_i32_0 : i32, i32
  }
  func.func @transform_3(%arg0: i32, %arg1: i32) -> (i32, i32) {
    %c0_i32 = arith.constant 0 : i32
    %c0_i32_0 = arith.constant 0 : i32
    return %arg0, %c0_i32 : i32, i32
  }
  func.func @transform_4(%arg0: i32, %arg1: i32) -> (i32, i32) {
    %c0_i32 = arith.constant 0 : i32
    %c0_i32_0 = arith.constant 0 : i32
    %c0_i32_1 = arith.constant 0 : i32
    return %c0_i32, %c0_i32_0 : i32, i32
  }
  func.func @transform_5(%arg0: i32, %arg1: i32) -> (i32, i32) {
    %c0_i32 = arith.constant 0 : i32
    %c0_i32_0 = arith.constant 0 : i32
    %c0_i32_1 = arith.constant 0 : i32
    return %c0_i32, %c0_i32_0 : i32, i32
  }
  func.func @transform_6(%arg0: i32, %arg1: i32) -> (i32, i32) {
    %c0_i32 = arith.constant 0 : i32
    %c0_i32_0 = arith.constant 0 : i32
    return %arg0, %c0_i32 : i32, i32
  }
}

module attributes {stable_mosaic.version = 11 : i64} {
  func.func @matmul_kernel(%arg0: i32, %arg1: i32, %arg2: i32, %arg3: memref<16x32xbf16, #tpu.memory_space<vmem>>, %arg4: memref<32x64xbf16, #tpu.memory_space<vmem>>, %arg5: memref<1x64xf32, #tpu.memory_space<vmem>>, %arg6: memref<16x64xf32, #tpu.memory_space<vmem>>, %arg7: memref<16x64xf32, #tpu.memory_space<vmem>>) attributes {dimension_semantics = [#tpu.dimension_semantics<parallel>, #tpu.dimension_semantics<parallel>, #tpu.dimension_semantics<arbitrary>], iteration_bounds = array<i64: 1, 1, 1>, scalar_prefetch = 0 : i64, scratch_operands = 1 : i64, tpu.core_type = #tpu.core_type<tc>, window_params = [{transform_indices = @transform_0, window_bounds = array<i64: 16, 32>}, {transform_indices = @transform_1, window_bounds = array<i64: 32, 64>}, {transform_indices = @transform_2, window_bounds = array<i64: 1, 64>}, {transform_indices = @transform_3, window_bounds = array<i64: 16, 64>}]} {
    %c0_i32 = arith.constant 0 : i32
    %0 = arith.cmpi eq, %arg2, %c0_i32 : i32
    %1 = arith.extui %0 : i1 to i32
    %c0_i32_0 = arith.constant 0 : i32
    %2 = arith.cmpi ne, %1, %c0_i32_0 : i32
    scf.if %2 {
      %c0_10 = arith.constant 0 : index
      %c0_11 = arith.constant 0 : index
      %12 = vector.load %arg5[%c0_10, %c0_11] : memref<1x64xf32, #tpu.memory_space<vmem>>, vector<1x64xf32>
      %13 = vector.shape_cast %12 : vector<1x64xf32> to vector<1x64xf32>
      %14 = vector.broadcast %13 : vector<1x64xf32> to vector<16x64xf32>
      %c0_12 = arith.constant 0 : index
      %c0_13 = arith.constant 0 : index
      %15 = vector.load %arg7[%c0_12, %c0_13] : memref<16x64xf32, #tpu.memory_space<vmem>>, vector<16x64xf32>
      tpu.vector_store %arg7[%c0_12, %c0_13], %14 {strides = array<i32>} : memref<16x64xf32, #tpu.memory_space<vmem>>, vector<16x64xf32>,
    } else {
    }
    %c0 = arith.constant 0 : index
    %c0_1 = arith.constant 0 : index
    %3 = vector.load %arg7[%c0, %c0_1] : memref<16x64xf32, #tpu.memory_space<vmem>>, vector<16x64xf32>
    %c0_2 = arith.constant 0 : index
    %c0_3 = arith.constant 0 : index
    %4 = vector.load %arg3[%c0_2, %c0_3] : memref<16x32xbf16, #tpu.memory_space<vmem>>, vector<16x32xbf16>
    %c0_4 = arith.constant 0 : index
    %c0_5 = arith.constant 0 : index
    %5 = vector.load %arg4[%c0_4, %c0_5] : memref<32x64xbf16, #tpu.memory_space<vmem>>, vector<32x64xbf16>
    %cst = arith.constant dense<0.000000e+00> : vector<16x64xf32>
    %6 = tpu.matmul %4, %5, %cst {dimension_numbers = #tpu.dot_dimension_numbers<[1], [0], [0], [1], [0, 0, 1, 1], [], []>} : vector<16x32xbf16>, vector<32x64xbf16>, vector<16x64xf32> -> vector<16x64xf32>
    %7 = arith.addf %3, %6 : vector<16x64xf32>
    %c0_6 = arith.constant 0 : index
    %c0_7 = arith.constant 0 : index
    %8 = vector.load %arg7[%c0_6, %c0_7] : memref<16x64xf32, #tpu.memory_space<vmem>>, vector<16x64xf32>
    tpu.vector_store %arg7[%c0_6, %c0_7], %7 {strides = array<i32>} : memref<16x64xf32, #tpu.memory_space<vmem>>, vector<16x64xf32>,
    %c0_i32_8 = arith.constant 0 : i32
    %9 = arith.cmpi eq, %arg2, %c0_i32_8 : i32
    %10 = arith.extui %9 : i1 to i32
    %c0_i32_9 = arith.constant 0 : i32
    %11 = arith.cmpi ne, %10, %c0_i32_9 : i32
    scf.if %11 {
      %c0_10 = arith.constant 0 : index
      %c0_11 = arith.constant 0 : index
      %12 = vector.load %arg7[%c0_10, %c0_11] : memref<16x64xf32, #tpu.memory_space<vmem>>, vector<16x64xf32>
      %c0_12 = arith.constant 0 : index
      %c0_13 = arith.constant 0 : index
      %13 = vector.load %arg6[%c0_12, %c0_13] : memref<16x64xf32, #tpu.memory_space<vmem>>, vector<16x64xf32>
      tpu.vector_store %arg6[%c0_12, %c0_13], %12 {strides = array<i32>} : memref<16x64xf32, #tpu.memory_space<vmem>>, vector<16x64xf32>,
    } else {
    }
    return
  }
  func.func @transform_0(%arg0: i32, %arg1: i32, %arg2: i32) -> (i32, i32) {
    %c0_i32 = arith.constant 0 : i32
    return %arg0, %arg2 : i32, i32
  }
  func.func @transform_1(%arg0: i32, %arg1: i32, %arg2: i32) -> (i32, i32) {
    %c0_i32 = arith.constant 0 : i32
    return %arg2, %arg1 : i32, i32
  }
  func.func @transform_2(%arg0: i32, %arg1: i32, %arg2: i32) -> (i32, i32) {
    %c0_i32 = arith.constant 0 : i32
    %c0_i32_0 = arith.constant 0 : i32
    return %c0_i32, %arg1 : i32, i32
  }
  func.func @transform_3(%arg0: i32, %arg1: i32, %arg2: i32) -> (i32, i32) {
    %c0_i32 = arith.constant 0 : i32
    return %arg0, %arg1 : i32, i32
  }
}

</mosaic_0001>

<llo_original>
// kernel: transformer_forward.42
$region0: #{transformer_forward.42}
  #allocation0 [shape = 'u32[]', space=smem, size = 0x4, offset = 0x4, fixed_abs, tag = 'smem constant byte address 0x4 - core index']
  #allocation1 [shape = 'u32[144,128]{1,0:T(1,128)}', space=vmem, size = 0x12000, scoped, tag = 'internal scratch']
  #allocation2 [shape = 'f32[8,1]{1,0:T(8,128)}', space=vmem, size = 0x1000, scoped, tag = 'scratch operand']
  #allocation3 [shape = 'f32[8,1]{1,0:T(8,128)}', space=vmem, size = 0x1000, scoped, tag = 'scratch operand']
  #allocation4 [shape = 'f32[8,8]{1,0:T(8,128)}', space=vmem, size = 0x1000, scoped, tag = 'scratch operand']
  %s0 = inlined_call_operand.vmem [shape: bf16[8,8,8], index: 0, kind: input, shape index: {}]
  %s1 = inlined_call_operand.vmem [shape: bf16[8,8,8], index: 1, kind: input, shape index: {}]
  %s2 = inlined_call_operand.vmem [shape: bf16[8,8,8], index: 2, kind: input, shape index: {}]
  %s3 = inlined_call_operand.vmem [shape: bf16[8,8,8], index: 3, kind: output, shape index: {}]
  %s4 = sld [smem:[#allocation0]]
  $region53: #{transformer_forward.42} parent=0
    _
  %s6 = ssub.s32 1, %s4
  %s7 = scalar_select 0, %s6, %s4
  loop: start=0, step=1, limit=10
  $region2: #{transformer_forward.42} parent=0 // loop_pre_header
    _
  $region3: #{transformer_forward.42} parent=0 // loop_header
    %s9 = sphi 0, %s13
    %p10 = scmp.ge.s32.totalorder %s9, 10
    %s16 = sphi 0, %s35
    %s17 = sphi 0, %s31
    %s18 = sphi 0, %s27
    %s19 = sphi 0, %s16
    %s20 = sphi 0, %s17
    %s21 = sphi 0, %s18
    %s22 = sphi 0, %s19
    %s23 = sphi 0, %s20
    %s24 = sphi 0, %s21
    %s40 = sphi 0, %s42
    %s43 = sphi 0, %s40
    %s44 = sphi 0, %s43
    %s60 = sphi 0, %s44
    %s68 = sphi 0, %s70
    %s71 = sphi 0, %s68
    %s72 = sphi 0, %s71
    %s88 = sphi 0, %s72
    %s96 = sphi 0, %s98
    %s99 = sphi 0, %s96
    %s100 = sphi 0, %s99
    %s116 = sphi 0, %s100
    %s124 = sphi 0, %s126
    %s127 = sphi 0, %s124
    %s128 = sphi 0, %s127
    %s144 = sphi 0, %s128
  $region4: #{transformer_forward.42} parent=0 // loop_header_branch
    %12 = sbr.rel (%p10) target = $region8
  $region5: #{transformer_forward.42} parent=0 // loop_body
    %s14 = ssub.s32 %s9, 1
    %s15 = ssub.s32 %s9, 2
    %s25 = sadd.s32 1, %s18
    %p26 = scmp.ge.s32.totalorder %s25, 1
    %s27 = scalar_select %p26, 0, %s25
    %s28 = sadd.s32 1, %s17
    %s29 = scalar_select %p26, %s28, %s17
    %p30 = scmp.ge.s32.totalorder %s29, 1
    %s31 = scalar_select %p30, 0, %s29
    %s32 = sadd.s32 1, %s16
    %s33 = scalar_select %p30, %s32, %s16
    %p34 = scmp.ge.s32.totalorder %s33, 8
    %s35 = scalar_select %p34, 0, %s33
    %s36 = ssub.s32 %s16, %s35
    %s37 = ssub.s32 %s17, %s31
    %s38 = sor.u32 %s36, %s37
    %p39 = scmp.eq.s32.totalorder %s38, 0
    %s41 = sadd.s32 %s40, 1
    %s42 = scalar_select %p39, %s40, %s41
    %p45 = pneg %p39
    %p46 = scmp.eq.s32.totalorder %s9, 7
    %p47 = por %p45, %p46
    %p48 = scmp.ne.s32.totalorder %s40, %s43
    %p49 = scmp.eq.s32.totalorder %s9, 0
    %p50 = por %p48, %p49
    %p51 = scmp.ne.s32.totalorder %s40, %s43
    %p52 = scmp.eq.s32.totalorder %s14, 7
    %p53 = por %p51, %p52
    %p54 = scmp.ne.s32.totalorder %s43, %s44
    %p55 = scmp.eq.s32.totalorder %s14, 0
    %p56 = por %p54, %p55
    %p57 = scmp.ne.s32.totalorder %s43, %s44
    %p58 = scmp.eq.s32.totalorder %s15, 7
    %p59 = por %p57, %p58
    %p61 = scmp.ne.s32.totalorder %s44, %s60
    %p62 = scmp.eq.s32.totalorder %s15, 0
    %p63 = por %p61, %p62
    %s64 = ssub.s32 %s16, %s35
    %s65 = ssub.s32 %s18, %s27
    %s66 = sor.u32 %s64, %s65
    %p67 = scmp.eq.s32.totalorder %s66, 0
    %s69 = sadd.s32 %s68, 1
    %s70 = scalar_select %p67, %s68, %s69
    %p73 = pneg %p67
    %p74 = scmp.eq.s32.totalorder %s9, 7
    %p75 = por %p73, %p74
    %p76 = scmp.ne.s32.totalorder %s68, %s71
    %p77 = scmp.eq.s32.totalorder %s9, 0
    %p78 = por %p76, %p77
    %p79 = scmp.ne.s32.totalorder %s68, %s71
    %p80 = scmp.eq.s32.totalorder %s14, 7
    %p81 = por %p79, %p80
    %p82 = scmp.ne.s32.totalorder %s71, %s72
    %p83 = scmp.eq.s32.totalorder %s14, 0
    %p84 = por %p82, %p83
    %p85 = scmp.ne.s32.totalorder %s71, %s72
    %p86 = scmp.eq.s32.totalorder %s15, 7
    %p87 = por %p85, %p86
    %p89 = scmp.ne.s32.totalorder %s72, %s88
    %p90 = scmp.eq.s32.totalorder %s15, 0
    %p91 = por %p89, %p90
    %s92 = ssub.s32 %s16, %s35
    %s93 = ssub.s32 %s18, %s27
    %s94 = sor.u32 %s92, %s93
    %p95 = scmp.eq.s32.totalorder %s94, 0
    %s97 = sadd.s32 %s96, 1
    %s98 = scalar_select %p95, %s96, %s97
    %p101 = pneg %p95
    %p102 = scmp.eq.s32.totalorder %s9, 7
    %p103 = por %p101, %p102
    %p104 = scmp.ne.s32.totalorder %s96, %s99
    %p105 = scmp.eq.s32.totalorder %s9, 0
    %p106 = por %p104, %p105
    %p107 = scmp.ne.s32.totalorder %s96, %s99
    %p108 = scmp.eq.s32.totalorder %s14, 7
    %p109 = por %p107, %p108
    %p110 = scmp.ne.s32.totalorder %s99, %s100
    %p111 = scmp.eq.s32.totalorder %s14, 0
    %p112 = por %p110, %p111
    %p113 = scmp.ne.s32.totalorder %s99, %s100
    %p114 = scmp.eq.s32.totalorder %s15, 7
    %p115 = por %p113, %p114
    %p117 = scmp.ne.s32.totalorder %s100, %s116
    %p118 = scmp.eq.s32.totalorder %s15, 0
    %p119 = por %p117, %p118
    %s120 = ssub.s32 %s16, %s35
    %s121 = ssub.s32 %s17, %s31
    %s122 = sor.u32 %s120, %s121
    %p123 = scmp.eq.s32.totalorder %s122, 0
    %s125 = sadd.s32 %s124, 1
    %s126 = scalar_select %p123, %s124, %s125
    %p129 = pneg %p123
    %p130 = scmp.eq.s32.totalorder %s9, 7
    %p131 = por %p129, %p130
    %p132 = scmp.ne.s32.totalorder %s124, %s127
    %p133 = scmp.eq.s32.totalorder %s9, 0
    %p134 = por %p132, %p133
    %p135 = scmp.ne.s32.totalorder %s124, %s127
    %p136 = scmp.eq.s32.totalorder %s14, 7
    %p137 = por %p135, %p136
    %p138 = scmp.ne.s32.totalorder %s127, %s128
    %p139 = scmp.eq.s32.totalorder %s14, 0
    %p140 = por %p138, %p139
    %p141 = scmp.ne.s32.totalorder %s127, %s128
    %p142 = scmp.eq.s32.totalorder %s15, 7
    %p143 = por %p141, %p142
    %p145 = scmp.ne.s32.totalorder %s128, %s144
    %p146 = scmp.eq.s32.totalorder %s15, 0
    %p147 = por %p145, %p146
    %p148 = scmp.le.s32.totalorder 1, %s9
    %p149 = scmp.lt.s32.totalorder %s9, 9
    %p150 = pnand %p148, %p149
    %p151 = pneg %p150
    // Predicated region
    $region9: #{transformer_forward.42} parent=5 // pred_check
      _
    $region10: #{transformer_forward.42} parent=5 // pred_check_branch
      %153 = sbr.rel (%p150) target = $region12
    $region11: #{transformer_forward.42} parent=5 // pred_region
      %s154 = ssub.s32 %s9, 1
    $region12: #{transformer_forward.42} parent=5 // pred_fallthru
      _
    %p155 = scmp.lt.s32.totalorder %s9, 8
    // Predicated region
    $region13: #{transformer_forward.42} parent=5 // pred_check
      %p156 = pneg %p155
    $region14: #{transformer_forward.42} parent=5 // pred_check_branch
      %158 = sbr.rel (%p156) target = $region16
    $region15: #{transformer_forward.42} parent=5 // pred_region
      // Predicated region
      $region17: #{transformer_forward.42} parent=15 // pred_check
        %p159 = pneg %p50
      $region18: #{transformer_forward.42} parent=15 // pred_check_branch
        %161 = sbr.rel (%p159) target = $region20
      $region19: #{transformer_forward.42} parent=15 // pred_region
        %p162 = scmp.lt.s32.totalorder %s16, 7
        %s163 = scalar_select %p162, %s16, 7
        %p164 = scmp.lt.s32.totalorder %s17, 0
        %s165 = scalar_select %p164, %s17, 0
        %s166 = sadd.s32 %s165, %s163
        %s167 = smul.addr %s166, 4
        %s168 = scalar_lea.vmem %s0, %s167
      $region20: #{transformer_forward.42} parent=15 // pred_fallthru
        _
      // Predicated region
      $region21: #{transformer_forward.42} parent=15 // pred_check
        %p169 = pneg %p78
      $region22: #{transformer_forward.42} parent=15 // pred_check_branch
        %171 = sbr.rel (%p169) target = $region24
      $region23: #{transformer_forward.42} parent=15 // pred_region
        %p172 = scmp.lt.s32.totalorder %s16, 7
        %s173 = scalar_select %p172, %s16, 7
        %p174 = scmp.lt.s32.totalorder %s18, 0
        %s175 = scalar_select %p174, %s18, 0
        %s176 = sadd.s32 %s175, %s173
        %s177 = smul.addr %s176, 4
        %s178 = scalar_lea.vmem %s1, %s177
      $region24: #{transformer_forward.42} parent=15 // pred_fallthru
        _
      // Predicated region
      $region25: #{transformer_forward.42} parent=15 // pred_check
        %p179 = pneg %p106
      $region26: #{transformer_forward.42} parent=15 // pred_check_branch
        %181 = sbr.rel (%p179) target = $region28
      $region27: #{transformer_forward.42} parent=15 // pred_region
        %p182 = scmp.lt.s32.totalorder %s16, 7
        %s183 = scalar_select %p182, %s16, 7
        %p184 = scmp.lt.s32.totalorder %s18, 0
        %s185 = scalar_select %p184, %s18, 0
        %s186 = sadd.s32 %s185, %s183
        %s187 = smul.addr %s186, 4
        %s188 = scalar_lea.vmem %s2, %s187
      $region28: #{transformer_forward.42} parent=15 // pred_fallthru
        _
    $region16: #{transformer_forward.42} parent=5 // pred_fallthru
      _
    %p189 = scmp.le.s32.totalorder 1, %s9
    %p190 = scmp.lt.s32.totalorder %s9, 9
    %p191 = pnand %p189, %p190
    %p192 = pneg %p191
    // Predicated region
    $region29: #{transformer_forward.42} parent=5 // pred_check
      _
    $region30: #{transformer_forward.42} parent=5 // pred_check_branch
      %194 = sbr.rel (%p191) target = $region32
    $region31: #{transformer_forward.42} parent=5 // pred_region
      %s195 = ssub.s32 %s9, 1
      %p196 = scmp.lt.s32.totalorder %s19, 7
      %s197 = scalar_select %p196, %s19, 7
      %p198 = scmp.lt.s32.totalorder %s20, 0
      %s199 = scalar_select %p198, %s20, 0
      %s200 = sadd.s32 %s199, %s197
      %s201 = smul.addr %s200, 4
      %s202 = scalar_lea.vmem %s0, %s201
      %p203 = pneg %p56
      %p204 = pneg %p53
      %p205 = scmp.lt.s32.totalorder %s19, 7
      %s206 = scalar_select %p205, %s19, 7
      %p207 = scmp.lt.s32.totalorder %s21, 0
      %s208 = scalar_select %p207, %s21, 0
      %s209 = sadd.s32 %s208, %s206
      %s210 = smul.addr %s209, 4
      %s211 = scalar_lea.vmem %s1, %s210
      %p212 = pneg %p84
      %p213 = pneg %p81
      %p214 = scmp.lt.s32.totalorder %s19, 7
      %s215 = scalar_select %p214, %s19, 7
      %p216 = scmp.lt.s32.totalorder %s21, 0
      %s217 = scalar_select %p216, %s21, 0
      %s218 = sadd.s32 %s217, %s215
      %s219 = smul.addr %s218, 4
      %s220 = scalar_lea.vmem %s2, %s219
      %p221 = pneg %p112
      %p222 = pneg %p109
      %p223 = pneg %p140
      %p224 = pneg %p137
      %p225 = scmp.lt.s32.totalorder %s19, 7
      %s226 = scalar_select %p225, %s19, 7
      %p227 = scmp.lt.s32.totalorder %s20, 0
      %s228 = scalar_select %p227, %s20, 0
      %s229 = sadd.s32 %s228, %s226
      %s230 = smul.addr %s229, 4
      %s231 = scalar_lea.vmem %s3, %s230
      %p232 = scmp.lt.s32.totalorder %s19, 7
      %s233 = scalar_select %p232, %s19, 7
      %p234 = scmp.lt.s32.totalorder %s20, 0
      %s235 = scalar_select %p234, %s20, 0
      %s236 = sadd.s32 %s235, %s233
      %s237 = smul.addr %s236, 4
      %s238 = scalar_lea.vmem %s0, %s237
      %p239 = scmp.lt.s32.totalorder %s19, 7
      %s240 = scalar_select %p239, %s19, 7
      %p241 = scmp.lt.s32.totalorder %s21, 0
      %s242 = scalar_select %p241, %s21, 0
      %s243 = sadd.s32 %s242, %s240
      %s244 = smul.addr %s243, 4
      %s245 = scalar_lea.vmem %s1, %s244
      %p246 = scmp.lt.s32.totalorder %s19, 7
      %s247 = scalar_select %p246, %s19, 7
      %p248 = scmp.lt.s32.totalorder %s21, 0
      %s249 = scalar_select %p248, %s21, 0
      %s250 = sadd.s32 %s249, %s247
      %s251 = smul.addr %s250, 4
      %s252 = scalar_lea.vmem %s2, %s251
      %p253 = scmp.lt.s32.totalorder %s19, 7
      %s254 = scalar_select %p253, %s19, 7
      %p255 = scmp.lt.s32.totalorder %s20, 0
      %s256 = scalar_select %p255, %s20, 0
      %s257 = sadd.s32 %s256, %s254
      %s258 = smul.addr %s257, 4
      %s259 = scalar_lea.vmem %s3, %s258
      %p262 = scmp.eq.s32.totalorder %s21, 0
      // Predicated region
      $region33: #{transformer_forward.42} parent=31 // pred_check
        %p263 = pneg %p262
      $region34: #{transformer_forward.42} parent=31 // pred_check_branch
        %265 = sbr.rel (%p263) target = $region36
      $region35: #{transformer_forward.42} parent=31 // pred_region
        %vm266 = vcmask 7168
        %267 = vst.msk [vmem:[#allocation2] sm:$0xff] %vm266, -inf
        %268 = vst.msk [vmem:[#allocation3] sm:$0xff] %vm266, 0.0
        %vm269 = vcmask 64512
        %270 = vst.msk [vmem:[#allocation4] sm:$0xff] %vm269, 0.0
      $region36: #{transformer_forward.42} parent=31 // pred_fallthru
        _
      %v271 = vld [vmem:[%s238] sm:$0xf]
      %v272 = vmul.bf16 %v271, 1052065461
      %v273 = vld [vmem:[%s245] sm:$0xf]
      %vm274 = vcmask 64512
      %v276 = vsel %vm274, %v272, 0
      %v279 = vsel %vm274, %v273, 0
      %281 = vmatprep.subr.bf16.mxu0 0
      %282 = vmatpush1.bf16.xpose.msra.mxu0 %v279
      %283 = vmatprep.subr.bf16.mxu0 0
      %284 = vmatpush1.bf16.xpose.msra.mxu0 0
      %285 = vmatprep.subr.bf16.mxu0 0
      %286 = vmatpush1.bf16.xpose.msra.mxu0 0
      %287 = vmatprep.subr.bf16.mxu0 0
      %288 = vmatpush1.bf16.xpose.msra.mxu0 0
      %289 = vmatprep.subr.bf16.mxu0 0
      %290 = vmatpush1.bf16.xpose.msra.mxu0 0
      %291 = vmatprep.subr.bf16.mxu0 0
      %292 = vmatpush1.bf16.xpose.msra.mxu0 0
      %293 = vmatprep.subr.bf16.mxu0 0
      %294 = vmatpush1.bf16.xpose.msra.mxu0 0
      %295 = vmatprep.subr.bf16.mxu0 0
      %296 = vmatpush1.bf16.xpose.msra.mxu0 0
      %297 = vmatprep.subr.bf16.mxu0 0
      %298 = vmatpush1.bf16.xpose.msra.mxu0 0
      %299 = vmatprep.subr.bf16.mxu0 0
      %300 = vmatpush1.bf16.xpose.msra.mxu0 0
      %301 = vmatprep.subr.bf16.mxu0 0
      %302 = vmatpush1.bf16.xpose.msra.mxu0 0
      %303 = vmatprep.subr.bf16.mxu0 0
      %304 = vmatpush1.bf16.xpose.msra.mxu0 0
      %305 = vmatprep.subr.bf16.mxu0 0
      %306 = vmatpush1.bf16.xpose.msra.mxu0 0
      %307 = vmatprep.subr.bf16.mxu0 0
      %308 = vmatpush1.bf16.xpose.msra.mxu0 0
      %309 = vmatprep.subr.bf16.mxu0 0
      %310 = vmatpush1.bf16.xpose.msra.mxu0 0
      %311 = vmatprep.subr.bf16.mxu0 0
      %312 = vmatpush1.bf16.xpose.msra.mxu0 0
      %313 = vmatprep.mubr.bf16.mxu0 0
      %314 = vmatmul.mubr.bf16.gmra.mrb[0].mxu0 %v276
      %v315 = vpop.f32.mrb[0].mxu0
      %v316 = vadd.f32 0.0, %v315
      %v317 = vpop.f32.mrb[0].mxu0
      %v318 = vpop.f32.mrb[0].mxu0
      %v319 = vpop.f32.mrb[0].mxu0
      %320 = vdwg.mxu0
      %v321 = vld [vmem:[#allocation2] sm:$0xff]
      %v322 = vsel %vm274, %v316, -inf
      %323 = vmax.xlane.f32.xlu0 %v322
      %v324 = vpop.xlane.xlu0 %323
      %v325 = vmax.f32 %v321, %v324
      %v326 = vsub.f32 %v321, %v325
      %v327 = vmul.f32 %v326, 1.442695
      %v328 = vpow.pop %v327
      %330 = vset.pattern.permute.xlu0 0
      %331 = vperm.xlu0 %330, %v325
      %v332 = vpop.permute.xlu0 %331
      %v334 = vsub.f32 %v316, %v332
      %v335 = vmul.f32 %v334, 1.442695
      %v336 = vpow.pop %v335
      %v337 = vld [vmem:[#allocation3] sm:$0xff]
      %v338 = vmul.f32 %v328, %v337
      %v339 = vsel %vm274, %v336, 0.0
      %340 = vadd.xlane.f32.xlu0 %v339
      %v341 = vpop.xlane.xlu0 %340
      %v342 = vadd.f32 %v338, %v341
      %vm343 = vcmask 7168
      %344 = vst.msk [vmem:[#allocation3] sm:$0xff] %vm343, %v342
      %v345 = vld [vmem:[#allocation4] sm:$0xff]
      %347 = vset.pattern.permute.xlu0 0
      %348 = vperm.xlu0 %347, %v328
      %v349 = vpop.permute.xlu0 %348
      %v351 = vmul.f32 %v349, %v345
      %v352 = vpack.c.bf16 %v336, %v336
      %v353 = vld [vmem:[%s252] sm:$0xf]
      %v355 = vsel %vm274, %v352, 0
      %vm357 = vcmask 1043456
      %v359 = vsel %vm357, %v353, 0
      %361 = vmatprep.subr.bf16.mxu0 0
      %362 = vmatpush1.bf16.msra.mxu0 %v359
      %363 = vmatprep.subr.bf16.mxu0 0
      %364 = vmatpush1.bf16.msra.mxu0 0
      %365 = vmatprep.subr.bf16.mxu0 0
      %366 = vmatpush1.bf16.msra.mxu0 0
      %367 = vmatprep.subr.bf16.mxu0 0
      %368 = vmatpush1.bf16.msra.mxu0 0
      %369 = vmatprep.subr.bf16.mxu0 0
      %370 = vmatpush1.bf16.msra.mxu0 0
      %371 = vmatprep.subr.bf16.mxu0 0
      %372 = vmatpush1.bf16.msra.mxu0 0
      %373 = vmatprep.subr.bf16.mxu0 0
      %374 = vmatpush1.bf16.msra.mxu0 0
      %375 = vmatprep.subr.bf16.mxu0 0
      %376 = vmatpush1.bf16.msra.mxu0 0
      %377 = vmatprep.subr.bf16.mxu0 0
      %378 = vmatpush1.bf16.msra.mxu0 0
      %379 = vmatprep.subr.bf16.mxu0 0
      %380 = vmatpush1.bf16.msra.mxu0 0
      %381 = vmatprep.subr.bf16.mxu0 0
      %382 = vmatpush1.bf16.msra.mxu0 0
      %383 = vmatprep.subr.bf16.mxu0 0
      %384 = vmatpush1.bf16.msra.mxu0 0
      %385 = vmatprep.subr.bf16.mxu0 0
      %386 = vmatpush1.bf16.msra.mxu0 0
      %387 = vmatprep.subr.bf16.mxu0 0
      %388 = vmatpush1.bf16.msra.mxu0 0
      %389 = vmatprep.subr.bf16.mxu0 0
      %390 = vmatpush1.bf16.msra.mxu0 0
      %391 = vmatprep.subr.bf16.mxu0 0
      %392 = vmatpush1.bf16.msra.mxu0 0
      %393 = vmatprep.mubr.bf16.mxu0 0
      %394 = vmatmul.mubr.bf16.gmra.mrb[0].mxu0 %v355
      %v395 = vpop.f32.mrb[0].mxu0
      %v396 = vadd.f32 0.0, %v395
      %v397 = vpop.f32.mrb[0].mxu0
      %v398 = vpop.f32.mrb[0].mxu0
      %v399 = vpop.f32.mrb[0].mxu0
      %400 = vdwg.mxu0
      %v401 = vadd.f32 %v351, %v396
      %402 = vst.msk [vmem:[#allocation4] sm:$0xff] %vm274, %v401
      %403 = vst.msk [vmem:[#allocation2] sm:$0xff] %vm343, %v325
      // Predicated region
      $region37: #{transformer_forward.42} parent=31 // pred_check
        %p404 = pneg %p262
      $region38: #{transformer_forward.42} parent=31 // pred_check_branch
        %406 = sbr.rel (%p404) target = $region40
      $region39: #{transformer_forward.42} parent=31 // pred_region
        %v407 = vld [vmem:[#allocation3] sm:$0xff]
        %v408 = vrcp.pop %v407
        %v409 = vld [vmem:[#allocation4] sm:$0xff]
        %411 = vset.pattern.permute.xlu0 0
        %412 = vperm.xlu0 %411, %v408
        %v413 = vpop.permute.xlu0 %412
        %v415 = vmul.f32 %v409, %v413
        %v416 = vpack.c.bf16 %v415, %v415
        %vm417 = vcmask 60416
        %418 = vst.msk [vmem:[%s259] sm:$0xf] %vm417, %v416
      $region40: #{transformer_forward.42} parent=31 // pred_fallthru
        _
      %p419 = scmp.lt.s32.totalorder %s19, 7
      %s420 = scalar_select %p419, %s19, 7
      %p421 = scmp.lt.s32.totalorder %s20, 0
      %s422 = scalar_select %p421, %s20, 0
      %s423 = sadd.s32 %s422, %s420
      %s424 = smul.addr %s423, 4
      %s425 = scalar_lea.vmem %s3, %s424
      // Predicated region
      $region41: #{transformer_forward.42} parent=31 // pred_check
        %p426 = pneg %p137
      $region42: #{transformer_forward.42} parent=31 // pred_check_branch
        %428 = sbr.rel (%p426) target = $region44
      $region43: #{transformer_forward.42} parent=31 // pred_region
        _
      $region44: #{transformer_forward.42} parent=31 // pred_fallthru
        _
    $region32: #{transformer_forward.42} parent=5 // pred_fallthru
      _
    %p429 = scmp.le.s32.totalorder 2, %s9
    // Predicated region
    $region45: #{transformer_forward.42} parent=5 // pred_check
      %p430 = pneg %p429
    $region46: #{transformer_forward.42} parent=5 // pred_check_branch
      %432 = sbr.rel (%p430) target = $region48
    $region47: #{transformer_forward.42} parent=5 // pred_region
      %s433 = ssub.s32 %s9, 2
      // Predicated region
      $region49: #{transformer_forward.42} parent=47 // pred_check
        %p434 = pneg %p143
      $region50: #{transformer_forward.42} parent=47 // pred_check_branch
        %436 = sbr.rel (%p434) target = $region52
      $region51: #{transformer_forward.42} parent=47 // pred_region
        %p437 = scmp.lt.s32.totalorder %s22, 7
        %s438 = scalar_select %p437, %s22, 7
        %p439 = scmp.lt.s32.totalorder %s23, 0
        %s440 = scalar_select %p439, %s23, 0
        %s441 = sadd.s32 %s440, %s438
        %s442 = smul.addr %s441, 4
        %s443 = scalar_lea.vmem %s3, %s442
      $region52: #{transformer_forward.42} parent=47 // pred_fallthru
        _
    $region48: #{transformer_forward.42} parent=5 // pred_fallthru
      _
  $region6: #{transformer_forward.42} parent=0 // loop_footer
    %s13 = sadd.s32 1, %s9
  $region7: #{transformer_forward.42} parent=0 // loop_footer_branch
    %8 = sbr.rel target = $region3
  $region8: #{transformer_forward.42} parent=0 // loop_exit
    _

// kernel: transformer_forward.44
$region0: #{transformer_forward.44}
  #allocation0 [shape = 'u32[]', space=smem, size = 0x4, offset = 0x4, fixed_abs, tag = 'smem constant byte address 0x4 - core index']
  #allocation1 [shape = 'u32[144,128]{1,0:T(1,128)}', space=vmem, size = 0x12000, scoped, tag = 'internal scratch']
  #allocation2 [shape = 'f32[16,32]{1,0:T(8,128)}', space=vmem, size = 0x2000, scoped, tag = 'scratch operand']
  %s0 = inlined_call_operand.vmem [shape: bf16[16,32], index: 0, kind: input, shape index: {}]
  %s1 = inlined_call_operand.vmem [shape: bf16[32,32], index: 1, kind: input, shape index: {}]
  %s2 = inlined_call_operand.vmem [shape: f32[1,32], index: 2, kind: input, shape index: {}]
  %s3 = inlined_call_operand.vmem [shape: bf16[16,32], index: 3, kind: output, shape index: {}]
  %s4 = sld [smem:[#allocation0]]
  $region30: #{transformer_forward.44} parent=0
    _
  %s6 = ssub.s32 1, %s4
  %s7 = scalar_select 0, %s6, %s4
  // Predicated region
  $region2: #{transformer_forward.44} parent=0 // pred_check
    _
  $region3: #{transformer_forward.44} parent=0 // pred_check_branch
    %9 = sbr.rel (0) target = $region5
  $region4: #{transformer_forward.44} parent=0 // pred_region
    _
  $region5: #{transformer_forward.44} parent=0 // pred_fallthru
    _
  // Predicated region
  $region6: #{transformer_forward.44} parent=0 // pred_check
    _
  $region7: #{transformer_forward.44} parent=0 // pred_check_branch
    %11 = sbr.rel (0) target = $region9
  $region8: #{transformer_forward.44} parent=0 // pred_region
    _
  $region9: #{transformer_forward.44} parent=0 // pred_fallthru
    _
  // Predicated region
  $region10: #{transformer_forward.44} parent=0 // pred_check
    _
  $region11: #{transformer_forward.44} parent=0 // pred_check_branch
    %13 = sbr.rel (0) target = $region13
  $region12: #{transformer_forward.44} parent=0 // pred_region
    _
  $region13: #{transformer_forward.44} parent=0 // pred_fallthru
    _
  %p15 = scmp.eq.s32.totalorder 0, 0
  // Predicated region
  $region14: #{transformer_forward.44} parent=0 // pred_check
    %p16 = pneg %p15
  $region15: #{transformer_forward.44} parent=0 // pred_check_branch
    %18 = sbr.rel (%p16) target = $region17
  $region16: #{transformer_forward.44} parent=0 // pred_region
    %v19 = vld [vmem:[%s2] sm:$0x1]
    %v21 = vlaneseq
    %v22 = vshrl.u32 %v21, 7
    %v23 = vsub.s32 0, %v22
    %v24 = vrot.slane %v19, %v23
    %vm26 = vcmask 261120
    %27 = vst.msk [vmem:[#allocation2] sm:$0xff] %vm26, %v24
    %28 = vst.msk [vmem:[#allocation2 + $0x8] sm:$0xff] %vm26, %v24
  $region17: #{transformer_forward.44} parent=0 // pred_fallthru
    _
  %v29 = vld [vmem:[#allocation2] sm:$0xff]
  %v30 = vld [vmem:[#allocation2 + $0x8] sm:$0xff]
  %v31 = vld [vmem:[%s0] sm:$0xf]
  %v32 = vld [vmem:[%s0 + $0x4] sm:$0xf]
  %v33 = vld [vmem:[%s1] sm:$0xf]
  %v34 = vld [vmem:[%s1 + $0x4] sm:$0xf]
  %v35 = vld [vmem:[%s1 + $0x8] sm:$0xf]
  %v36 = vld [vmem:[%s1 + $0xc] sm:$0xf]
  %v39 = vunpack.c.l.b16 %v31
  %v40 = vunpack.c.l.b16 %v32
  %v41 = vpack.c.b16 %v40, %v39
  %v46 = vunpack.c.l.b16 %v33
  %v47 = vunpack.c.l.b16 %v34
  %v48 = vunpack.c.l.b16 %v35
  %v49 = vunpack.c.l.b16 %v36
  %v50 = vpack.c.b16 %v47, %v46
  %v51 = vpack.c.b16 %v49, %v48
  %vm54 = vcmask 261120
  %v56 = vsel %vm54, %v41, 0
  %58 = vmatprep.subr.bf16.mxu0 0
  %59 = vmatpush1.bf16.msra.mxu0 %v50
  %60 = vmatprep.subr.bf16.mxu0 0
  %61 = vmatpush1.bf16.msra.mxu0 %v51
  %62 = vmatprep.subr.bf16.mxu0 0
  %63 = vmatpush1.bf16.msra.mxu0 0
  %64 = vmatprep.subr.bf16.mxu0 0
  %65 = vmatpush1.bf16.msra.mxu0 0
  %66 = vmatprep.subr.bf16.mxu0 0
  %67 = vmatpush1.bf16.msra.mxu0 0
  %68 = vmatprep.subr.bf16.mxu0 0
  %69 = vmatpush1.bf16.msra.mxu0 0
  %70 = vmatprep.subr.bf16.mxu0 0
  %71 = vmatpush1.bf16.msra.mxu0 0
  %72 = vmatprep.subr.bf16.mxu0 0
  %73 = vmatpush1.bf16.msra.mxu0 0
  %74 = vmatprep.subr.bf16.mxu0 0
  %75 = vmatpush1.bf16.msra.mxu0 0
  %76 = vmatprep.subr.bf16.mxu0 0
  %77 = vmatpush1.bf16.msra.mxu0 0
  %78 = vmatprep.subr.bf16.mxu0 0
  %79 = vmatpush1.bf16.msra.mxu0 0
  %80 = vmatprep.subr.bf16.mxu0 0
  %81 = vmatpush1.bf16.msra.mxu0 0
  %82 = vmatprep.subr.bf16.mxu0 0
  %83 = vmatpush1.bf16.msra.mxu0 0
  %84 = vmatprep.subr.bf16.mxu0 0
  %85 = vmatpush1.bf16.msra.mxu0 0
  %86 = vmatprep.subr.bf16.mxu0 0
  %87 = vmatpush1.bf16.msra.mxu0 0
  %88 = vmatprep.subr.bf16.mxu0 0
  %89 = vmatpush1.bf16.msra.mxu0 0
  %90 = vmatprep.mubr.bf16.mxu0 0
  %91 = vmatmul.mubr.bf16.gmra.mrb[0].mxu0 %v56
  %v92 = vpop.f32.mrb[0].mxu0
  %v93 = vadd.f32 0.0, %v92
  %v94 = vpop.f32.mrb[0].mxu0
  %v95 = vpop.f32.mrb[0].mxu0
  %v96 = vadd.f32 0.0, %v95
  %v97 = vpop.f32.mrb[0].mxu0
  %98 = vdwg.mxu0
  %v99 = vadd.f32 %v29, %v93
  %v100 = vadd.f32 %v30, %v96
  %101 = vst.msk [vmem:[#allocation2] sm:$0xff] %vm54, %v99
  %102 = vst.msk [vmem:[#allocation2 + $0x8] sm:$0xff] %vm54, %v100
  // Predicated region
  $region18: #{transformer_forward.44} parent=0 // pred_check
    %p103 = pneg %p15
  $region19: #{transformer_forward.44} parent=0 // pred_check_branch
    %105 = sbr.rel (%p103) target = $region21
  $region20: #{transformer_forward.44} parent=0 // pred_region
    %v106 = vld [vmem:[#allocation2] sm:$0xff]
    %v107 = vld [vmem:[#allocation2 + $0x8] sm:$0xff]
    %v108 = vpack.c.bf16 %v107, %v106
    %v110 = vunpack.c.l.b16 %v108
    %v111 = vunpack.c.h.b16 %v108
    %v112 = vpack.c.b16 %v110, %v110
    %v113 = vpack.c.b16 %v111, %v111
    %vm116 = vcmask 257024
    %117 = vst.msk [vmem:[%s3] sm:$0xf] %vm116, %v112
    %118 = vst.msk [vmem:[%s3 + $0x4] sm:$0xf] %vm116, %v113
  $region21: #{transformer_forward.44} parent=0 // pred_fallthru
    _
  // Predicated region
  $region22: #{transformer_forward.44} parent=0 // pred_check
    _
  $region23: #{transformer_forward.44} parent=0 // pred_check_branch
    %120 = sbr.rel (0) target = $region25
  $region24: #{transformer_forward.44} parent=0 // pred_region
    _
  $region25: #{transformer_forward.44} parent=0 // pred_fallthru
    _
  // Predicated region
  $region26: #{transformer_forward.44} parent=0 // pred_check
    _
  $region27: #{transformer_forward.44} parent=0 // pred_check_branch
    %122 = sbr.rel (0) target = $region29
  $region28: #{transformer_forward.44} parent=0 // pred_region
    _
  $region29: #{transformer_forward.44} parent=0 // pred_fallthru
    _

// kernel: transformer_forward.41
$region0: #{transformer_forward.41}
  #allocation0 [shape = 'u32[]', space=smem, size = 0x4, offset = 0x4, fixed_abs, tag = 'smem constant byte address 0x4 - core index']
  #allocation1 [shape = 'u32[144,128]{1,0:T(1,128)}', space=vmem, size = 0x12000, scoped, tag = 'internal scratch']
  #allocation2 [shape = 'f32[16,96]{1,0:T(8,128)}', space=vmem, size = 0x2000, scoped, tag = 'scratch operand']
  %s0 = inlined_call_operand.vmem [shape: bf16[16,32], index: 0, kind: input, shape index: {}]
  %s1 = inlined_call_operand.vmem [shape: bf16[32,96], index: 1, kind: input, shape index: {}]
  %s2 = inlined_call_operand.vmem [shape: f32[1,96], index: 2, kind: input, shape index: {}]
  %s3 = inlined_call_operand.vmem [shape: bf16[16,96], index: 3, kind: output, shape index: {}]
  %s4 = sld [smem:[#allocation0]]
  $region30: #{transformer_forward.41} parent=0
    _
  %s6 = ssub.s32 1, %s4
  %s7 = scalar_select 0, %s6, %s4
  // Predicated region
  $region2: #{transformer_forward.41} parent=0 // pred_check
    _
  $region3: #{transformer_forward.41} parent=0 // pred_check_branch
    %9 = sbr.rel (0) target = $region5
  $region4: #{transformer_forward.41} parent=0 // pred_region
    _
  $region5: #{transformer_forward.41} parent=0 // pred_fallthru
    _
  // Predicated region
  $region6: #{transformer_forward.41} parent=0 // pred_check
    _
  $region7: #{transformer_forward.41} parent=0 // pred_check_branch
    %11 = sbr.rel (0) target = $region9
  $region8: #{transformer_forward.41} parent=0 // pred_region
    _
  $region9: #{transformer_forward.41} parent=0 // pred_fallthru
    _
  // Predicated region
  $region10: #{transformer_forward.41} parent=0 // pred_check
    _
  $region11: #{transformer_forward.41} parent=0 // pred_check_branch
    %13 = sbr.rel (0) target = $region13
  $region12: #{transformer_forward.41} parent=0 // pred_region
    _
  $region13: #{transformer_forward.41} parent=0 // pred_fallthru
    _
  %p15 = scmp.eq.s32.totalorder 0, 0
  // Predicated region
  $region14: #{transformer_forward.41} parent=0 // pred_check
    %p16 = pneg %p15
  $region15: #{transformer_forward.41} parent=0 // pred_check_branch
    %18 = sbr.rel (%p16) target = $region17
  $region16: #{transformer_forward.41} parent=0 // pred_region
    %v19 = vld [vmem:[%s2] sm:$0x1]
    %v21 = vlaneseq
    %v22 = vshrl.u32 %v21, 7
    %v23 = vsub.s32 0, %v22
    %v24 = vrot.slane %v19, %v23
    %vm26 = vcmask 785408
    %27 = vst.msk [vmem:[#allocation2] sm:$0xff] %vm26, %v24
    %28 = vst.msk [vmem:[#allocation2 + $0x8] sm:$0xff] %vm26, %v24
  $region17: #{transformer_forward.41} parent=0 // pred_fallthru
    _
  %v29 = vld [vmem:[#allocation2] sm:$0xff]
  %v30 = vld [vmem:[#allocation2 + $0x8] sm:$0xff]
  %v31 = vld [vmem:[%s0] sm:$0xf]
  %v32 = vld [vmem:[%s0 + $0x4] sm:$0xf]
  %v33 = vld [vmem:[%s1] sm:$0xf]
  %v34 = vld [vmem:[%s1 + $0x4] sm:$0xf]
  %v35 = vld [vmem:[%s1 + $0x8] sm:$0xf]
  %v36 = vld [vmem:[%s1 + $0xc] sm:$0xf]
  %v39 = vunpack.c.l.b16 %v31
  %v40 = vunpack.c.l.b16 %v32
  %v41 = vpack.c.b16 %v40, %v39
  %v46 = vunpack.c.l.b16 %v33
  %v47 = vunpack.c.l.b16 %v34
  %v48 = vunpack.c.l.b16 %v35
  %v49 = vunpack.c.l.b16 %v36
  %v50 = vpack.c.b16 %v47, %v46
  %v51 = vpack.c.b16 %v49, %v48
  %vm54 = vcmask 261120
  %v56 = vsel %vm54, %v41, 0
  %58 = vmatprep.subr.bf16.mxu0 0
  %59 = vmatpush1.bf16.msra.mxu0 %v50
  %60 = vmatprep.subr.bf16.mxu0 0
  %61 = vmatpush1.bf16.msra.mxu0 %v51
  %62 = vmatprep.subr.bf16.mxu0 0
  %63 = vmatpush1.bf16.msra.mxu0 0
  %64 = vmatprep.subr.bf16.mxu0 0
  %65 = vmatpush1.bf16.msra.mxu0 0
  %66 = vmatprep.subr.bf16.mxu0 0
  %67 = vmatpush1.bf16.msra.mxu0 0
  %68 = vmatprep.subr.bf16.mxu0 0
  %69 = vmatpush1.bf16.msra.mxu0 0
  %70 = vmatprep.subr.bf16.mxu0 0
  %71 = vmatpush1.bf16.msra.mxu0 0
  %72 = vmatprep.subr.bf16.mxu0 0
  %73 = vmatpush1.bf16.msra.mxu0 0
  %74 = vmatprep.subr.bf16.mxu0 0
  %75 = vmatpush1.bf16.msra.mxu0 0
  %76 = vmatprep.subr.bf16.mxu0 0
  %77 = vmatpush1.bf16.msra.mxu0 0
  %78 = vmatprep.subr.bf16.mxu0 0
  %79 = vmatpush1.bf16.msra.mxu0 0
  %80 = vmatprep.subr.bf16.mxu0 0
  %81 = vmatpush1.bf16.msra.mxu0 0
  %82 = vmatprep.subr.bf16.mxu0 0
  %83 = vmatpush1.bf16.msra.mxu0 0
  %84 = vmatprep.subr.bf16.mxu0 0
  %85 = vmatpush1.bf16.msra.mxu0 0
  %86 = vmatprep.subr.bf16.mxu0 0
  %87 = vmatpush1.bf16.msra.mxu0 0
  %88 = vmatprep.subr.bf16.mxu0 0
  %89 = vmatpush1.bf16.msra.mxu0 0
  %90 = vmatprep.mubr.bf16.mxu0 0
  %91 = vmatmul.mubr.bf16.gmra.mrb[0].mxu0 %v56
  %v92 = vpop.f32.mrb[0].mxu0
  %v93 = vadd.f32 0.0, %v92
  %v94 = vpop.f32.mrb[0].mxu0
  %v95 = vpop.f32.mrb[0].mxu0
  %v96 = vadd.f32 0.0, %v95
  %v97 = vpop.f32.mrb[0].mxu0
  %98 = vdwg.mxu0
  %v99 = vadd.f32 %v29, %v93
  %v100 = vadd.f32 %v30, %v96
  %vm101 = vcmask 785408
  %102 = vst.msk [vmem:[#allocation2] sm:$0xff] %vm101, %v99
  %103 = vst.msk [vmem:[#allocation2 + $0x8] sm:$0xff] %vm101, %v100
  // Predicated region
  $region18: #{transformer_forward.41} parent=0 // pred_check
    %p104 = pneg %p15
  $region19: #{transformer_forward.41} parent=0 // pred_check_branch
    %106 = sbr.rel (%p104) target = $region21
  $region20: #{transformer_forward.41} parent=0 // pred_region
    %v107 = vld [vmem:[#allocation2] sm:$0xff]
    %v108 = vld [vmem:[#allocation2 + $0x8] sm:$0xff]
    %v109 = vpack.c.bf16 %v108, %v107
    %v111 = vunpack.c.l.b16 %v109
    %v112 = vunpack.c.h.b16 %v109
    %v113 = vpack.c.b16 %v111, %v111
    %v114 = vpack.c.b16 %v112, %v112
    %vm117 = vcmask 781312
    %118 = vst.msk [vmem:[%s3] sm:$0xf] %vm117, %v113
    %119 = vst.msk [vmem:[%s3 + $0x4] sm:$0xf] %vm117, %v114
  $region21: #{transformer_forward.41} parent=0 // pred_fallthru
    _
  // Predicated region
  $region22: #{transformer_forward.41} parent=0 // pred_check
    _
  $region23: #{transformer_forward.41} parent=0 // pred_check_branch
    %121 = sbr.rel (0) target = $region25
  $region24: #{transformer_forward.41} parent=0 // pred_region
    _
  $region25: #{transformer_forward.41} parent=0 // pred_fallthru
    _
  // Predicated region
  $region26: #{transformer_forward.41} parent=0 // pred_check
    _
  $region27: #{transformer_forward.41} parent=0 // pred_check_branch
    %123 = sbr.rel (0) target = $region29
  $region28: #{transformer_forward.41} parent=0 // pred_region
    _
  $region29: #{transformer_forward.41} parent=0 // pred_fallthru
    _

// kernel: transformer_forward.43
$region0: #{transformer_forward.43}
  #allocation0 [shape = 'u32[]', space=smem, size = 0x4, offset = 0x4, fixed_abs, tag = 'smem constant byte address 0x4 - core index']
  #allocation1 [shape = 'u32[144,128]{1,0:T(1,128)}', space=vmem, size = 0x12000, scoped, tag = 'internal scratch']
  #allocation2 [shape = 'f32[16,32]{1,0:T(8,128)}', space=vmem, size = 0x2000, scoped, tag = 'scratch operand']
  %s0 = inlined_call_operand.vmem [shape: bf16[16,32], index: 0, kind: input, shape index: {}]
  %s1 = inlined_call_operand.vmem [shape: bf16[32,32], index: 1, kind: input, shape index: {}]
  %s2 = inlined_call_operand.vmem [shape: f32[1,32], index: 2, kind: input, shape index: {}]
  %s3 = inlined_call_operand.vmem [shape: bf16[16,32], index: 3, kind: input, shape index: {}]
  %s4 = inlined_call_operand.vmem [shape: f32[1,32], index: 4, kind: input, shape index: {}]
  %s5 = inlined_call_operand.vmem [shape: f32[1,32], index: 5, kind: input, shape index: {}]
  %s6 = inlined_call_operand.vmem [shape: bf16[16,32], index: 6, kind: output, shape index: {}]
  %s7 = sld [smem:[#allocation0]]
  $region42: #{transformer_forward.43} parent=0
    _
  %s9 = ssub.s32 1, %s7
  %s10 = scalar_select 0, %s9, %s7
  // Predicated region
  $region2: #{transformer_forward.43} parent=0 // pred_check
    _
  $region3: #{transformer_forward.43} parent=0 // pred_check_branch
    %12 = sbr.rel (0) target = $region5
  $region4: #{transformer_forward.43} parent=0 // pred_region
    _
  $region5: #{transformer_forward.43} parent=0 // pred_fallthru
    _
  // Predicated region
  $region6: #{transformer_forward.43} parent=0 // pred_check
    _
  $region7: #{transformer_forward.43} parent=0 // pred_check_branch
    %14 = sbr.rel (0) target = $region9
  $region8: #{transformer_forward.43} parent=0 // pred_region
    _
  $region9: #{transformer_forward.43} parent=0 // pred_fallthru
    _
  // Predicated region
  $region10: #{transformer_forward.43} parent=0 // pred_check
    _
  $region11: #{transformer_forward.43} parent=0 // pred_check_branch
    %16 = sbr.rel (0) target = $region13
  $region12: #{transformer_forward.43} parent=0 // pred_region
    _
  $region13: #{transformer_forward.43} parent=0 // pred_fallthru
    _
  // Predicated region
  $region14: #{transformer_forward.43} parent=0 // pred_check
    _
  $region15: #{transformer_forward.43} parent=0 // pred_check_branch
    %18 = sbr.rel (0) target = $region17
  $region16: #{transformer_forward.43} parent=0 // pred_region
    _
  $region17: #{transformer_forward.43} parent=0 // pred_fallthru
    _
  // Predicated region
  $region18: #{transformer_forward.43} parent=0 // pred_check
    _
  $region19: #{transformer_forward.43} parent=0 // pred_check_branch
    %20 = sbr.rel (0) target = $region21
  $region20: #{transformer_forward.43} parent=0 // pred_region
    _
  $region21: #{transformer_forward.43} parent=0 // pred_fallthru
    _
  // Predicated region
  $region22: #{transformer_forward.43} parent=0 // pred_check
    _
  $region23: #{transformer_forward.43} parent=0 // pred_check_branch
    %22 = sbr.rel (0) target = $region25
  $region24: #{transformer_forward.43} parent=0 // pred_region
    _
  $region25: #{transformer_forward.43} parent=0 // pred_fallthru
    _
  %p24 = scmp.eq.s32.totalorder 0, 0
  // Predicated region
  $region26: #{transformer_forward.43} parent=0 // pred_check
    %p25 = pneg %p24
  $region27: #{transformer_forward.43} parent=0 // pred_check_branch
    %27 = sbr.rel (%p25) target = $region29
  $region28: #{transformer_forward.43} parent=0 // pred_region
    %v28 = vld [vmem:[%s2] sm:$0x1]
    %v30 = vlaneseq
    %v31 = vshrl.u32 %v30, 7
    %v32 = vsub.s32 0, %v31
    %v33 = vrot.slane %v28, %v32
    %vm35 = vcmask 261120
    %36 = vst.msk [vmem:[#allocation2] sm:$0xff] %vm35, %v33
    %37 = vst.msk [vmem:[#allocation2 + $0x8] sm:$0xff] %vm35, %v33
  $region29: #{transformer_forward.43} parent=0 // pred_fallthru
    _
  %v38 = vld [vmem:[#allocation2] sm:$0xff]
  %v39 = vld [vmem:[#allocation2 + $0x8] sm:$0xff]
  %v40 = vld [vmem:[%s0] sm:$0xf]
  %v41 = vld [vmem:[%s0 + $0x4] sm:$0xf]
  %v42 = vld [vmem:[%s1] sm:$0xf]
  %v43 = vld [vmem:[%s1 + $0x4] sm:$0xf]
  %v44 = vld [vmem:[%s1 + $0x8] sm:$0xf]
  %v45 = vld [vmem:[%s1 + $0xc] sm:$0xf]
  %v48 = vunpack.c.l.b16 %v40
  %v49 = vunpack.c.l.b16 %v41
  %v50 = vpack.c.b16 %v49, %v48
  %v55 = vunpack.c.l.b16 %v42
  %v56 = vunpack.c.l.b16 %v43
  %v57 = vunpack.c.l.b16 %v44
  %v58 = vunpack.c.l.b16 %v45
  %v59 = vpack.c.b16 %v56, %v55
  %v60 = vpack.c.b16 %v58, %v57
  %vm63 = vcmask 261120
  %v65 = vsel %vm63, %v50, 0
  %67 = vmatprep.subr.bf16.mxu0 0
  %68 = vmatpush1.bf16.msra.mxu0 %v59
  %69 = vmatprep.subr.bf16.mxu0 0
  %70 = vmatpush1.bf16.msra.mxu0 %v60
  %71 = vmatprep.subr.bf16.mxu0 0
  %72 = vmatpush1.bf16.msra.mxu0 0
  %73 = vmatprep.subr.bf16.mxu0 0
  %74 = vmatpush1.bf16.msra.mxu0 0
  %75 = vmatprep.subr.bf16.mxu0 0
  %76 = vmatpush1.bf16.msra.mxu0 0
  %77 = vmatprep.subr.bf16.mxu0 0
  %78 = vmatpush1.bf16.msra.mxu0 0
  %79 = vmatprep.subr.bf16.mxu0 0
  %80 = vmatpush1.bf16.msra.mxu0 0
  %81 = vmatprep.subr.bf16.mxu0 0
  %82 = vmatpush1.bf16.msra.mxu0 0
  %83 = vmatprep.subr.bf16.mxu0 0
  %84 = vmatpush1.bf16.msra.mxu0 0
  %85 = vmatprep.subr.bf16.mxu0 0
  %86 = vmatpush1.bf16.msra.mxu0 0
  %87 = vmatprep.subr.bf16.mxu0 0
  %88 = vmatpush1.bf16.msra.mxu0 0
  %89 = vmatprep.subr.bf16.mxu0 0
  %90 = vmatpush1.bf16.msra.mxu0 0
  %91 = vmatprep.subr.bf16.mxu0 0
  %92 = vmatpush1.bf16.msra.mxu0 0
  %93 = vmatprep.subr.bf16.mxu0 0
  %94 = vmatpush1.bf16.msra.mxu0 0
  %95 = vmatprep.subr.bf16.mxu0 0
  %96 = vmatpush1.bf16.msra.mxu0 0
  %97 = vmatprep.subr.bf16.mxu0 0
  %98 = vmatpush1.bf16.msra.mxu0 0
  %99 = vmatprep.mubr.bf16.mxu0 0
  %100 = vmatmul.mubr.bf16.gmra.mrb[0].mxu0 %v65
  %v101 = vpop.f32.mrb[0].mxu0
  %v102 = vadd.f32 0.0, %v101
  %v103 = vpop.f32.mrb[0].mxu0
  %v104 = vpop.f32.mrb[0].mxu0
  %v105 = vadd.f32 0.0, %v104
  %v106 = vpop.f32.mrb[0].mxu0
  %107 = vdwg.mxu0
  %v108 = vadd.f32 %v38, %v102
  %v109 = vadd.f32 %v39, %v105
  %110 = vst.msk [vmem:[#allocation2] sm:$0xff] %vm63, %v108
  %111 = vst.msk [vmem:[#allocation2 + $0x8] sm:$0xff] %vm63, %v109
  // Predicated region
  $region30: #{transformer_forward.43} parent=0 // pred_check
    %p112 = pneg %p24
  $region31: #{transformer_forward.43} parent=0 // pred_check_branch
    %114 = sbr.rel (%p112) target = $region33
  $region32: #{transformer_forward.43} parent=0 // pred_region
    %v115 = vld [vmem:[#allocation2] sm:$0xff]
    %v116 = vld [vmem:[#allocation2 + $0x8] sm:$0xff]
    %v117 = vld [vmem:[%s3] sm:$0xf]
    %v118 = vld [vmem:[%s3 + $0x4] sm:$0xf]
    %v119 = vunpack.c.l.bf16 %v117
    %v120 = vunpack.c.l.bf16 %v118
    %v121 = vadd.f32 %v115, %v119
    %v122 = vadd.f32 %v116, %v120
    %v123 = vsel %vm63, %v121, 0.0
    %124 = vadd.xlane.f32.xlu0 %v123
    %v125 = vpop.xlane.xlu0 %124
    %v126 = vsel %vm63, %v122, 0.0
    %127 = vadd.xlane.f32.xlu0 %v126
    %v128 = vpop.xlane.xlu0 %127
    %v129 = vrcp.pop 32.0
    %v130 = vmul.f32 %v125, %v129
    %v131 = vmul.f32 %v128, %v129
    %v132 = vsub.f32 %v121, %v130
    %v133 = vsub.f32 %v122, %v131
    %v134 = vmul.f32 %v132, %v132
    %v135 = vmul.f32 %v133, %v133
    %v136 = vsel %vm63, %v134, 0.0
    %137 = vadd.xlane.f32.xlu0 %v136
    %v138 = vpop.xlane.xlu0 %137
    %v139 = vsel %vm63, %v135, 0.0
    %140 = vadd.xlane.f32.xlu0 %v139
    %v141 = vpop.xlane.xlu0 %140
    %v142 = vmul.f32 %v138, %v129
    %v143 = vmul.f32 %v141, %v129
    %v144 = vadd.f32 %v142, 1e-05
    %v145 = vadd.f32 %v143, 1e-05
    %v146 = vrsqrt.pop %v144
    %v147 = vrsqrt.pop %v145
    %v148 = vmul.f32 %v132, %v146
    %v149 = vmul.f32 %v133, %v147
    %v150 = vld [vmem:[%s4] sm:$0x1]
    %v152 = vlaneseq
    %v153 = vshrl.u32 %v152, 7
    %v154 = vsub.s32 0, %v153
    %v155 = vrot.slane %v150, %v154
    %v157 = vmul.f32 %v148, %v155
    %v158 = vmul.f32 %v149, %v155
    %v159 = vld [vmem:[%s5] sm:$0x1]
    %v161 = vlaneseq
    %v162 = vshrl.u32 %v161, 7
    %v163 = vsub.s32 0, %v162
    %v164 = vrot.slane %v159, %v163
    %v166 = vadd.f32 %v157, %v164
    %v167 = vadd.f32 %v158, %v164
    %v168 = vpack.c.bf16 %v167, %v166
    %v170 = vunpack.c.l.b16 %v168
    %v171 = vunpack.c.h.b16 %v168
    %v172 = vpack.c.b16 %v170, %v170
    %v173 = vpack.c.b16 %v171, %v171
    %vm176 = vcmask 257024
    %177 = vst.msk [vmem:[%s6] sm:$0xf] %vm176, %v172
    %178 = vst.msk [vmem:[%s6 + $0x4] sm:$0xf] %vm176, %v173
  $region33: #{transformer_forward.43} parent=0 // pred_fallthru
    _
  // Predicated region
  $region34: #{transformer_forward.43} parent=0 // pred_check
    _
  $region35: #{transformer_forward.43} parent=0 // pred_check_branch
    %180 = sbr.rel (0) target = $region37
  $region36: #{transformer_forward.43} parent=0 // pred_region
    _
  $region37: #{transformer_forward.43} parent=0 // pred_fallthru
    _
  // Predicated region
  $region38: #{transformer_forward.43} parent=0 // pred_check
    _
  $region39: #{transformer_forward.43} parent=0 // pred_check_branch
    %182 = sbr.rel (0) target = $region41
  $region40: #{transformer_forward.43} parent=0 // pred_region
    _
  $region41: #{transformer_forward.43} parent=0 // pred_fallthru
    _

// kernel: transformer_forward.40
$region0: #{transformer_forward.40}
  #allocation0 [shape = 'u32[]', space=smem, size = 0x4, offset = 0x4, fixed_abs, tag = 'smem constant byte address 0x4 - core index']
  #allocation1 [shape = 'u32[144,128]{1,0:T(1,128)}', space=vmem, size = 0x12000, scoped, tag = 'internal scratch']
  %s0 = inlined_call_operand.vmem [shape: bf16[16,32], index: 0, kind: input, shape index: {}]
  %s1 = inlined_call_operand.vmem [shape: f32[1,32], index: 1, kind: input, shape index: {}]
  %s2 = inlined_call_operand.vmem [shape: f32[1,32], index: 2, kind: input, shape index: {}]
  %s3 = inlined_call_operand.vmem [shape: bf16[16,32], index: 3, kind: output, shape index: {}]
  %s4 = sld [smem:[#allocation0]]
  $region22: #{transformer_forward.40} parent=0
    _
  %s6 = ssub.s32 1, %s4
  %s7 = scalar_select 0, %s6, %s4
  // Predicated region
  $region2: #{transformer_forward.40} parent=0 // pred_check
    _
  $region3: #{transformer_forward.40} parent=0 // pred_check_branch
    %9 = sbr.rel (0) target = $region5
  $region4: #{transformer_forward.40} parent=0 // pred_region
    _
  $region5: #{transformer_forward.40} parent=0 // pred_fallthru
    _
  // Predicated region
  $region6: #{transformer_forward.40} parent=0 // pred_check
    _
  $region7: #{transformer_forward.40} parent=0 // pred_check_branch
    %11 = sbr.rel (0) target = $region9
  $region8: #{transformer_forward.40} parent=0 // pred_region
    _
  $region9: #{transformer_forward.40} parent=0 // pred_fallthru
    _
  // Predicated region
  $region10: #{transformer_forward.40} parent=0 // pred_check
    _
  $region11: #{transformer_forward.40} parent=0 // pred_check_branch
    %13 = sbr.rel (0) target = $region13
  $region12: #{transformer_forward.40} parent=0 // pred_region
    _
  $region13: #{transformer_forward.40} parent=0 // pred_fallthru
    _
  %v14 = vld [vmem:[%s0] sm:$0xf]
  %v15 = vld [vmem:[%s0 + $0x4] sm:$0xf]
  %v16 = vunpack.c.l.bf16 %v14
  %v17 = vunpack.c.l.bf16 %v15
  %vm18 = vcmask 261120
  %v19 = vsel %vm18, %v16, 0.0
  %20 = vadd.xlane.f32.xlu0 %v19
  %v21 = vpop.xlane.xlu0 %20
  %v22 = vsel %vm18, %v17, 0.0
  %23 = vadd.xlane.f32.xlu0 %v22
  %v24 = vpop.xlane.xlu0 %23
  %v25 = vrcp.pop 32.0
  %v26 = vmul.f32 %v21, %v25
  %v27 = vmul.f32 %v24, %v25
  %v28 = vsub.f32 %v16, %v26
  %v29 = vsub.f32 %v17, %v27
  %v30 = vmul.f32 %v28, %v28
  %v31 = vmul.f32 %v29, %v29
  %v32 = vsel %vm18, %v30, 0.0
  %33 = vadd.xlane.f32.xlu0 %v32
  %v34 = vpop.xlane.xlu0 %33
  %v35 = vsel %vm18, %v31, 0.0
  %36 = vadd.xlane.f32.xlu0 %v35
  %v37 = vpop.xlane.xlu0 %36
  %v38 = vmul.f32 %v34, %v25
  %v39 = vmul.f32 %v37, %v25
  %v40 = vadd.f32 %v38, 1e-05
  %v41 = vadd.f32 %v39, 1e-05
  %v42 = vrsqrt.pop %v40
  %v43 = vrsqrt.pop %v41
  %v44 = vmul.f32 %v28, %v42
  %v45 = vmul.f32 %v29, %v43
  %v46 = vld [vmem:[%s1] sm:$0x1]
  %v48 = vlaneseq
  %v49 = vshrl.u32 %v48, 7
  %v50 = vsub.s32 0, %v49
  %v51 = vrot.slane %v46, %v50
  %v53 = vmul.f32 %v44, %v51
  %v54 = vmul.f32 %v45, %v51
  %v55 = vld [vmem:[%s2] sm:$0x1]
  %v57 = vlaneseq
  %v58 = vshrl.u32 %v57, 7
  %v59 = vsub.s32 0, %v58
  %v60 = vrot.slane %v55, %v59
  %v62 = vadd.f32 %v53, %v60
  %v63 = vadd.f32 %v54, %v60
  %v64 = vpack.c.bf16 %v63, %v62
  %v66 = vunpack.c.l.b16 %v64
  %v67 = vunpack.c.h.b16 %v64
  %v68 = vpack.c.b16 %v66, %v66
  %v69 = vpack.c.b16 %v67, %v67
  %vm72 = vcmask 257024
  %73 = vst.msk [vmem:[%s3] sm:$0xf] %vm72, %v68
  %74 = vst.msk [vmem:[%s3 + $0x4] sm:$0xf] %vm72, %v69
  // Predicated region
  $region14: #{transformer_forward.40} parent=0 // pred_check
    _
  $region15: #{transformer_forward.40} parent=0 // pred_check_branch
    %76 = sbr.rel (0) target = $region17
  $region16: #{transformer_forward.40} parent=0 // pred_region
    _
  $region17: #{transformer_forward.40} parent=0 // pred_fallthru
    _
  // Predicated region
  $region18: #{transformer_forward.40} parent=0 // pred_check
    _
  $region19: #{transformer_forward.40} parent=0 // pred_check_branch
    %78 = sbr.rel (0) target = $region21
  $region20: #{transformer_forward.40} parent=0 // pred_region
    _
  $region21: #{transformer_forward.40} parent=0 // pred_fallthru
    _

// kernel: transformer_forward.45
$region0: #{transformer_forward.45}
  #allocation0 [shape = 'u32[]', space=smem, size = 0x4, offset = 0x4, fixed_abs, tag = 'smem constant byte address 0x4 - core index']
  #allocation1 [shape = 'u32[144,128]{1,0:T(1,128)}', space=vmem, size = 0x12000, scoped, tag = 'internal scratch']
  #allocation2 [shape = 'f32[16,64]{1,0:T(8,128)}', space=vmem, size = 0x2000, scoped, tag = 'scratch operand']
  %s0 = inlined_call_operand.vmem [shape: bf16[16,32], index: 0, kind: input, shape index: {}]
  %s1 = inlined_call_operand.vmem [shape: bf16[32,64], index: 1, kind: input, shape index: {}]
  %s2 = inlined_call_operand.vmem [shape: f32[1,64], index: 2, kind: input, shape index: {}]
  %s3 = inlined_call_operand.vmem [shape: bf16[16,64], index: 3, kind: output, shape index: {}]
  %s4 = sld [smem:[#allocation0]]
  $region30: #{transformer_forward.45} parent=0
    _
  %s6 = ssub.s32 1, %s4
  %s7 = scalar_select 0, %s6, %s4
  // Predicated region
  $region2: #{transformer_forward.45} parent=0 // pred_check
    _
  $region3: #{transformer_forward.45} parent=0 // pred_check_branch
    %9 = sbr.rel (0) target = $region5
  $region4: #{transformer_forward.45} parent=0 // pred_region
    _
  $region5: #{transformer_forward.45} parent=0 // pred_fallthru
    _
  // Predicated region
  $region6: #{transformer_forward.45} parent=0 // pred_check
    _
  $region7: #{transformer_forward.45} parent=0 // pred_check_branch
    %11 = sbr.rel (0) target = $region9
  $region8: #{transformer_forward.45} parent=0 // pred_region
    _
  $region9: #{transformer_forward.45} parent=0 // pred_fallthru
    _
  // Predicated region
  $region10: #{transformer_forward.45} parent=0 // pred_check
    _
  $region11: #{transformer_forward.45} parent=0 // pred_check_branch
    %13 = sbr.rel (0) target = $region13
  $region12: #{transformer_forward.45} parent=0 // pred_region
    _
  $region13: #{transformer_forward.45} parent=0 // pred_fallthru
    _
  %p15 = scmp.eq.s32.totalorder 0, 0
  // Predicated region
  $region14: #{transformer_forward.45} parent=0 // pred_check
    %p16 = pneg %p15
  $region15: #{transformer_forward.45} parent=0 // pred_check_branch
    %18 = sbr.rel (%p16) target = $region17
  $region16: #{transformer_forward.45} parent=0 // pred_region
    %v19 = vld [vmem:[%s2] sm:$0x1]
    %v21 = vlaneseq
    %v22 = vshrl.u32 %v21, 7
    %v23 = vsub.s32 0, %v22
    %v24 = vrot.slane %v19, %v23
    %vm26 = vcmask 523264
    %27 = vst.msk [vmem:[#allocation2] sm:$0xff] %vm26, %v24
    %28 = vst.msk [vmem:[#allocation2 + $0x8] sm:$0xff] %vm26, %v24
  $region17: #{transformer_forward.45} parent=0 // pred_fallthru
    _
  %v29 = vld [vmem:[#allocation2] sm:$0xff]
  %v30 = vld [vmem:[#allocation2 + $0x8] sm:$0xff]
  %v31 = vld [vmem:[%s0] sm:$0xf]
  %v32 = vld [vmem:[%s0 + $0x4] sm:$0xf]
  %v33 = vld [vmem:[%s1] sm:$0xf]
  %v34 = vld [vmem:[%s1 + $0x4] sm:$0xf]
  %v35 = vld [vmem:[%s1 + $0x8] sm:$0xf]
  %v36 = vld [vmem:[%s1 + $0xc] sm:$0xf]
  %v39 = vunpack.c.l.b16 %v31
  %v40 = vunpack.c.l.b16 %v32
  %v41 = vpack.c.b16 %v40, %v39
  %v46 = vunpack.c.l.b16 %v33
  %v47 = vunpack.c.l.b16 %v34
  %v48 = vunpack.c.l.b16 %v35
  %v49 = vunpack.c.l.b16 %v36
  %v50 = vpack.c.b16 %v47, %v46
  %v51 = vpack.c.b16 %v49, %v48
  %vm54 = vcmask 261120
  %v56 = vsel %vm54, %v41, 0
  %58 = vmatprep.subr.bf16.mxu0 0
  %59 = vmatpush1.bf16.msra.mxu0 %v50
  %60 = vmatprep.subr.bf16.mxu0 0
  %61 = vmatpush1.bf16.msra.mxu0 %v51
  %62 = vmatprep.subr.bf16.mxu0 0
  %63 = vmatpush1.bf16.msra.mxu0 0
  %64 = vmatprep.subr.bf16.mxu0 0
  %65 = vmatpush1.bf16.msra.mxu0 0
  %66 = vmatprep.subr.bf16.mxu0 0
  %67 = vmatpush1.bf16.msra.mxu0 0
  %68 = vmatprep.subr.bf16.mxu0 0
  %69 = vmatpush1.bf16.msra.mxu0 0
  %70 = vmatprep.subr.bf16.mxu0 0
  %71 = vmatpush1.bf16.msra.mxu0 0
  %72 = vmatprep.subr.bf16.mxu0 0
  %73 = vmatpush1.bf16.msra.mxu0 0
  %74 = vmatprep.subr.bf16.mxu0 0
  %75 = vmatpush1.bf16.msra.mxu0 0
  %76 = vmatprep.subr.bf16.mxu0 0
  %77 = vmatpush1.bf16.msra.mxu0 0
  %78 = vmatprep.subr.bf16.mxu0 0
  %79 = vmatpush1.bf16.msra.mxu0 0
  %80 = vmatprep.subr.bf16.mxu0 0
  %81 = vmatpush1.bf16.msra.mxu0 0
  %82 = vmatprep.subr.bf16.mxu0 0
  %83 = vmatpush1.bf16.msra.mxu0 0
  %84 = vmatprep.subr.bf16.mxu0 0
  %85 = vmatpush1.bf16.msra.mxu0 0
  %86 = vmatprep.subr.bf16.mxu0 0
  %87 = vmatpush1.bf16.msra.mxu0 0
  %88 = vmatprep.subr.bf16.mxu0 0
  %89 = vmatpush1.bf16.msra.mxu0 0
  %90 = vmatprep.mubr.bf16.mxu0 0
  %91 = vmatmul.mubr.bf16.gmra.mrb[0].mxu0 %v56
  %v92 = vpop.f32.mrb[0].mxu0
  %v93 = vadd.f32 0.0, %v92
  %v94 = vpop.f32.mrb[0].mxu0
  %v95 = vpop.f32.mrb[0].mxu0
  %v96 = vadd.f32 0.0, %v95
  %v97 = vpop.f32.mrb[0].mxu0
  %98 = vdwg.mxu0
  %v99 = vadd.f32 %v29, %v93
  %v100 = vadd.f32 %v30, %v96
  %vm101 = vcmask 523264
  %102 = vst.msk [vmem:[#allocation2] sm:$0xff] %vm101, %v99
  %103 = vst.msk [vmem:[#allocation2 + $0x8] sm:$0xff] %vm101, %v100
  // Predicated region
  $region18: #{transformer_forward.45} parent=0 // pred_check
    %p104 = pneg %p15
  $region19: #{transformer_forward.45} parent=0 // pred_check_branch
    %106 = sbr.rel (%p104) target = $region21
  $region20: #{transformer_forward.45} parent=0 // pred_region
    %v107 = vld [vmem:[#allocation2] sm:$0xff]
    %v108 = vld [vmem:[#allocation2 + $0x8] sm:$0xff]
    %v109 = vpack.c.bf16 %v108, %v107
    %v111 = vunpack.c.l.b16 %v109
    %v112 = vunpack.c.h.b16 %v109
    %v113 = vpack.c.b16 %v111, %v111
    %v114 = vpack.c.b16 %v112, %v112
    %vm117 = vcmask 519168
    %118 = vst.msk [vmem:[%s3] sm:$0xf] %vm117, %v113
    %119 = vst.msk [vmem:[%s3 + $0x4] sm:$0xf] %vm117, %v114
  $region21: #{transformer_forward.45} parent=0 // pred_fallthru
    _
  // Predicated region
  $region22: #{transformer_forward.45} parent=0 // pred_check
    _
  $region23: #{transformer_forward.45} parent=0 // pred_check_branch
    %121 = sbr.rel (0) target = $region25
  $region24: #{transformer_forward.45} parent=0 // pred_region
    _
  $region25: #{transformer_forward.45} parent=0 // pred_fallthru
    _
  // Predicated region
  $region26: #{transformer_forward.45} parent=0 // pred_check
    _
  $region27: #{transformer_forward.45} parent=0 // pred_check_branch
    %123 = sbr.rel (0) target = $region29
  $region28: #{transformer_forward.45} parent=0 // pred_region
    _
  $region29: #{transformer_forward.45} parent=0 // pred_fallthru
    _

// kernel: transformer_forward.33
$region0: #{transformer_forward.33}
  #allocation0 [shape = 'u32[]', space=smem, size = 0x4, offset = 0x4, fixed_abs, tag = 'smem constant byte address 0x4 - core index']
  #allocation1 [shape = 'u32[144,128]{1,0:T(1,128)}', space=vmem, size = 0x12000, scoped, tag = 'internal scratch']
  #allocation2 [shape = 'f32[16,64]{1,0:T(8,128)}', space=vmem, size = 0x2000, scoped, tag = 'scratch operand']
  %s0 = inlined_call_operand.vmem [shape: bf16[16,32], index: 0, kind: input, shape index: {}]
  %s1 = inlined_call_operand.vmem [shape: bf16[32,64], index: 1, kind: input, shape index: {}]
  %s2 = inlined_call_operand.vmem [shape: f32[1,64], index: 2, kind: input, shape index: {}]
  %s3 = inlined_call_operand.vmem [shape: bf16[16,64], index: 3, kind: output, shape index: {}]
  %s4 = sld [smem:[#allocation0]]
  $region30: #{transformer_forward.33} parent=0
    _
  %s6 = ssub.s32 1, %s4
  %s7 = scalar_select 0, %s6, %s4
  // Predicated region
  $region2: #{transformer_forward.33} parent=0 // pred_check
    _
  $region3: #{transformer_forward.33} parent=0 // pred_check_branch
    %9 = sbr.rel (0) target = $region5
  $region4: #{transformer_forward.33} parent=0 // pred_region
    _
  $region5: #{transformer_forward.33} parent=0 // pred_fallthru
    _
  // Predicated region
  $region6: #{transformer_forward.33} parent=0 // pred_check
    _
  $region7: #{transformer_forward.33} parent=0 // pred_check_branch
    %11 = sbr.rel (0) target = $region9
  $region8: #{transformer_forward.33} parent=0 // pred_region
    _
  $region9: #{transformer_forward.33} parent=0 // pred_fallthru
    _
  // Predicated region
  $region10: #{transformer_forward.33} parent=0 // pred_check
    _
  $region11: #{transformer_forward.33} parent=0 // pred_check_branch
    %13 = sbr.rel (0) target = $region13
  $region12: #{transformer_forward.33} parent=0 // pred_region
    _
  $region13: #{transformer_forward.33} parent=0 // pred_fallthru
    _
  %p15 = scmp.eq.s32.totalorder 0, 0
  // Predicated region
  $region14: #{transformer_forward.33} parent=0 // pred_check
    %p16 = pneg %p15
  $region15: #{transformer_forward.33} parent=0 // pred_check_branch
    %18 = sbr.rel (%p16) target = $region17
  $region16: #{transformer_forward.33} parent=0 // pred_region
    %v19 = vld [vmem:[%s2] sm:$0x1]
    %v21 = vlaneseq
    %v22 = vshrl.u32 %v21, 7
    %v23 = vsub.s32 0, %v22
    %v24 = vrot.slane %v19, %v23
    %vm26 = vcmask 523264
    %27 = vst.msk [vmem:[#allocation2] sm:$0xff] %vm26, %v24
    %28 = vst.msk [vmem:[#allocation2 + $0x8] sm:$0xff] %vm26, %v24
  $region17: #{transformer_forward.33} parent=0 // pred_fallthru
    _
  %v29 = vld [vmem:[#allocation2] sm:$0xff]
  %v30 = vld [vmem:[#allocation2 + $0x8] sm:$0xff]
  %v31 = vld [vmem:[%s0] sm:$0xf]
  %v32 = vld [vmem:[%s0 + $0x4] sm:$0xf]
  %v33 = vld [vmem:[%s1] sm:$0xf]
  %v34 = vld [vmem:[%s1 + $0x4] sm:$0xf]
  %v35 = vld [vmem:[%s1 + $0x8] sm:$0xf]
  %v36 = vld [vmem:[%s1 + $0xc] sm:$0xf]
  %v39 = vunpack.c.l.b16 %v31
  %v40 = vunpack.c.l.b16 %v32
  %v41 = vpack.c.b16 %v40, %v39
  %v46 = vunpack.c.l.b16 %v33
  %v47 = vunpack.c.l.b16 %v34
  %v48 = vunpack.c.l.b16 %v35
  %v49 = vunpack.c.l.b16 %v36
  %v50 = vpack.c.b16 %v47, %v46
  %v51 = vpack.c.b16 %v49, %v48
  %vm54 = vcmask 261120
  %v56 = vsel %vm54, %v41, 0
  %58 = vmatprep.subr.bf16.mxu0 0
  %59 = vmatpush1.bf16.msra.mxu0 %v50
  %60 = vmatprep.subr.bf16.mxu0 0
  %61 = vmatpush1.bf16.msra.mxu0 %v51
  %62 = vmatprep.subr.bf16.mxu0 0
  %63 = vmatpush1.bf16.msra.mxu0 0
  %64 = vmatprep.subr.bf16.mxu0 0
  %65 = vmatpush1.bf16.msra.mxu0 0
  %66 = vmatprep.subr.bf16.mxu0 0
  %67 = vmatpush1.bf16.msra.mxu0 0
  %68 = vmatprep.subr.bf16.mxu0 0
  %69 = vmatpush1.bf16.msra.mxu0 0
  %70 = vmatprep.subr.bf16.mxu0 0
  %71 = vmatpush1.bf16.msra.mxu0 0
  %72 = vmatprep.subr.bf16.mxu0 0
  %73 = vmatpush1.bf16.msra.mxu0 0
  %74 = vmatprep.subr.bf16.mxu0 0
  %75 = vmatpush1.bf16.msra.mxu0 0
  %76 = vmatprep.subr.bf16.mxu0 0
  %77 = vmatpush1.bf16.msra.mxu0 0
  %78 = vmatprep.subr.bf16.mxu0 0
  %79 = vmatpush1.bf16.msra.mxu0 0
  %80 = vmatprep.subr.bf16.mxu0 0
  %81 = vmatpush1.bf16.msra.mxu0 0
  %82 = vmatprep.subr.bf16.mxu0 0
  %83 = vmatpush1.bf16.msra.mxu0 0
  %84 = vmatprep.subr.bf16.mxu0 0
  %85 = vmatpush1.bf16.msra.mxu0 0
  %86 = vmatprep.subr.bf16.mxu0 0
  %87 = vmatpush1.bf16.msra.mxu0 0
  %88 = vmatprep.subr.bf16.mxu0 0
  %89 = vmatpush1.bf16.msra.mxu0 0
  %90 = vmatprep.mubr.bf16.mxu0 0
  %91 = vmatmul.mubr.bf16.gmra.mrb[0].mxu0 %v56
  %v92 = vpop.f32.mrb[0].mxu0
  %v93 = vadd.f32 0.0, %v92
  %v94 = vpop.f32.mrb[0].mxu0
  %v95 = vpop.f32.mrb[0].mxu0
  %v96 = vadd.f32 0.0, %v95
  %v97 = vpop.f32.mrb[0].mxu0
  %98 = vdwg.mxu0
  %v99 = vadd.f32 %v29, %v93
  %v100 = vadd.f32 %v30, %v96
  %vm101 = vcmask 523264
  %102 = vst.msk [vmem:[#allocation2] sm:$0xff] %vm101, %v99
  %103 = vst.msk [vmem:[#allocation2 + $0x8] sm:$0xff] %vm101, %v100
  // Predicated region
  $region18: #{transformer_forward.33} parent=0 // pred_check
    %p104 = pneg %p15
  $region19: #{transformer_forward.33} parent=0 // pred_check_branch
    %106 = sbr.rel (%p104) target = $region21
  $region20: #{transformer_forward.33} parent=0 // pred_region
    %v107 = vld [vmem:[#allocation2] sm:$0xff]
    %v108 = vld [vmem:[#allocation2 + $0x8] sm:$0xff]
    %v109 = vmul.f32 %v107, 0.5
    %v110 = vmul.f32 %v108, 0.5
    %v111 = vmul.f32 %v107, 0.044715
    %v112 = vmul.f32 %v108, 0.044715
    %v113 = vmul.f32 %v111, %v107
    %v114 = vmul.f32 %v112, %v108
    %v115 = vmul.f32 %v113, %v107
    %v116 = vmul.f32 %v114, %v108
    %v117 = vadd.f32 %v107, %v115
    %v118 = vadd.f32 %v108, %v116
    %v119 = vmul.f32 %v117, 0.7978846
    %v120 = vmul.f32 %v118, 0.7978846
    %v121 = vtanh.pop %v119
    %v122 = vtanh.pop %v120
    %v123 = vadd.f32 %v121, 1.0
    %v124 = vadd.f32 %v122, 1.0
    %v125 = vmul.f32 %v109, %v123
    %v126 = vmul.f32 %v110, %v124
    %v127 = vpack.c.bf16 %v126, %v125
    %v129 = vunpack.c.l.b16 %v127
    %v130 = vunpack.c.h.b16 %v127
    %v131 = vpack.c.b16 %v129, %v129
    %v132 = vpack.c.b16 %v130, %v130
    %vm135 = vcmask 519168
    %136 = vst.msk [vmem:[%s3] sm:$0xf] %vm135, %v131
    %137 = vst.msk [vmem:[%s3 + $0x4] sm:$0xf] %vm135, %v132
  $region21: #{transformer_forward.33} parent=0 // pred_fallthru
    _
  // Predicated region
  $region22: #{transformer_forward.33} parent=0 // pred_check
    _
  $region23: #{transformer_forward.33} parent=0 // pred_check_branch
    %139 = sbr.rel (0) target = $region25
  $region24: #{transformer_forward.33} parent=0 // pred_region
    _
  $region25: #{transformer_forward.33} parent=0 // pred_fallthru
    _
  // Predicated region
  $region26: #{transformer_forward.33} parent=0 // pred_check
    _
  $region27: #{transformer_forward.33} parent=0 // pred_check_branch
    %141 = sbr.rel (0) target = $region29
  $region28: #{transformer_forward.33} parent=0 // pred_region
    _
  $region29: #{transformer_forward.33} parent=0 // pred_fallthru
    _

// kernel: transformer_forward.34
$region0: #{transformer_forward.34}
  #allocation0 [shape = 'u32[]', space=smem, size = 0x4, offset = 0x4, fixed_abs, tag = 'smem constant byte address 0x4 - core index']
  #allocation1 [shape = 'u32[144,128]{1,0:T(1,128)}', space=vmem, size = 0x12000, scoped, tag = 'internal scratch']
  #allocation2 [shape = 'f32[16,32]{1,0:T(8,128)}', space=vmem, size = 0x2000, scoped, tag = 'scratch operand']
  %s0 = inlined_call_operand.vmem [shape: bf16[16,64], index: 0, kind: input, shape index: {}]
  %s1 = inlined_call_operand.vmem [shape: bf16[64,32], index: 1, kind: input, shape index: {}]
  %s2 = inlined_call_operand.vmem [shape: f32[1,32], index: 2, kind: input, shape index: {}]
  %s3 = inlined_call_operand.vmem [shape: bf16[16,32], index: 3, kind: input, shape index: {}]
  %s4 = inlined_call_operand.vmem [shape: f32[1,32], index: 4, kind: input, shape index: {}]
  %s5 = inlined_call_operand.vmem [shape: f32[1,32], index: 5, kind: input, shape index: {}]
  %s6 = inlined_call_operand.vmem [shape: bf16[16,32], index: 6, kind: output, shape index: {}]
  %s7 = sld [smem:[#allocation0]]
  $region42: #{transformer_forward.34} parent=0
    _
  %s9 = ssub.s32 1, %s7
  %s10 = scalar_select 0, %s9, %s7
  // Predicated region
  $region2: #{transformer_forward.34} parent=0 // pred_check
    _
  $region3: #{transformer_forward.34} parent=0 // pred_check_branch
    %12 = sbr.rel (0) target = $region5
  $region4: #{transformer_forward.34} parent=0 // pred_region
    _
  $region5: #{transformer_forward.34} parent=0 // pred_fallthru
    _
  // Predicated region
  $region6: #{transformer_forward.34} parent=0 // pred_check
    _
  $region7: #{transformer_forward.34} parent=0 // pred_check_branch
    %14 = sbr.rel (0) target = $region9
  $region8: #{transformer_forward.34} parent=0 // pred_region
    _
  $region9: #{transformer_forward.34} parent=0 // pred_fallthru
    _
  // Predicated region
  $region10: #{transformer_forward.34} parent=0 // pred_check
    _
  $region11: #{transformer_forward.34} parent=0 // pred_check_branch
    %16 = sbr.rel (0) target = $region13
  $region12: #{transformer_forward.34} parent=0 // pred_region
    _
  $region13: #{transformer_forward.34} parent=0 // pred_fallthru
    _
  // Predicated region
  $region14: #{transformer_forward.34} parent=0 // pred_check
    _
  $region15: #{transformer_forward.34} parent=0 // pred_check_branch
    %18 = sbr.rel (0) target = $region17
  $region16: #{transformer_forward.34} parent=0 // pred_region
    _
  $region17: #{transformer_forward.34} parent=0 // pred_fallthru
    _
  // Predicated region
  $region18: #{transformer_forward.34} parent=0 // pred_check
    _
  $region19: #{transformer_forward.34} parent=0 // pred_check_branch
    %20 = sbr.rel (0) target = $region21
  $region20: #{transformer_forward.34} parent=0 // pred_region
    _
  $region21: #{transformer_forward.34} parent=0 // pred_fallthru
    _
  // Predicated region
  $region22: #{transformer_forward.34} parent=0 // pred_check
    _
  $region23: #{transformer_forward.34} parent=0 // pred_check_branch
    %22 = sbr.rel (0) target = $region25
  $region24: #{transformer_forward.34} parent=0 // pred_region
    _
  $region25: #{transformer_forward.34} parent=0 // pred_fallthru
    _
  %p24 = scmp.eq.s32.totalorder 0, 0
  // Predicated region
  $region26: #{transformer_forward.34} parent=0 // pred_check
    %p25 = pneg %p24
  $region27: #{transformer_forward.34} parent=0 // pred_check_branch
    %27 = sbr.rel (%p25) target = $region29
  $region28: #{transformer_forward.34} parent=0 // pred_region
    %v28 = vld [vmem:[%s2] sm:$0x1]
    %v30 = vlaneseq
    %v31 = vshrl.u32 %v30, 7
    %v32 = vsub.s32 0, %v31
    %v33 = vrot.slane %v28, %v32
    %vm35 = vcmask 261120
    %36 = vst.msk [vmem:[#allocation2] sm:$0xff] %vm35, %v33
    %37 = vst.msk [vmem:[#allocation2 + $0x8] sm:$0xff] %vm35, %v33
  $region29: #{transformer_forward.34} parent=0 // pred_fallthru
    _
  %v38 = vld [vmem:[#allocation2] sm:$0xff]
  %v39 = vld [vmem:[#allocation2 + $0x8] sm:$0xff]
  %v40 = vld [vmem:[%s0] sm:$0xf]
  %v41 = vld [vmem:[%s0 + $0x4] sm:$0xf]
  %v42 = vld [vmem:[%s1] sm:$0xf]
  %v43 = vld [vmem:[%s1 + $0x4] sm:$0xf]
  %v44 = vld [vmem:[%s1 + $0x8] sm:$0xf]
  %v45 = vld [vmem:[%s1 + $0xc] sm:$0xf]
  %v46 = vld [vmem:[%s1 + $0x10] sm:$0xf]
  %v47 = vld [vmem:[%s1 + $0x14] sm:$0xf]
  %v48 = vld [vmem:[%s1 + $0x18] sm:$0xf]
  %v49 = vld [vmem:[%s1 + $0x1c] sm:$0xf]
  %v52 = vunpack.c.l.b16 %v40
  %v53 = vunpack.c.l.b16 %v41
  %v54 = vpack.c.b16 %v53, %v52
  %v63 = vunpack.c.l.b16 %v42
  %v64 = vunpack.c.l.b16 %v43
  %v65 = vunpack.c.l.b16 %v44
  %v66 = vunpack.c.l.b16 %v45
  %v67 = vunpack.c.l.b16 %v46
  %v68 = vunpack.c.l.b16 %v47
  %v69 = vunpack.c.l.b16 %v48
  %v70 = vunpack.c.l.b16 %v49
  %v71 = vpack.c.b16 %v64, %v63
  %v72 = vpack.c.b16 %v66, %v65
  %v73 = vpack.c.b16 %v68, %v67
  %v74 = vpack.c.b16 %v70, %v69
  %vm79 = vcmask 523264
  %v81 = vsel %vm79, %v54, 0
  %83 = vmatprep.subr.bf16.mxu0 0
  %84 = vmatpush1.bf16.msra.mxu0 %v71
  %85 = vmatprep.subr.bf16.mxu0 0
  %86 = vmatpush1.bf16.msra.mxu0 %v72
  %87 = vmatprep.subr.bf16.mxu0 0
  %88 = vmatpush1.bf16.msra.mxu0 %v73
  %89 = vmatprep.subr.bf16.mxu0 0
  %90 = vmatpush1.bf16.msra.mxu0 %v74
  %91 = vmatprep.subr.bf16.mxu0 0
  %92 = vmatpush1.bf16.msra.mxu0 0
  %93 = vmatprep.subr.bf16.mxu0 0
  %94 = vmatpush1.bf16.msra.mxu0 0
  %95 = vmatprep.subr.bf16.mxu0 0
  %96 = vmatpush1.bf16.msra.mxu0 0
  %97 = vmatprep.subr.bf16.mxu0 0
  %98 = vmatpush1.bf16.msra.mxu0 0
  %99 = vmatprep.subr.bf16.mxu0 0
  %100 = vmatpush1.bf16.msra.mxu0 0
  %101 = vmatprep.subr.bf16.mxu0 0
  %102 = vmatpush1.bf16.msra.mxu0 0
  %103 = vmatprep.subr.bf16.mxu0 0
  %104 = vmatpush1.bf16.msra.mxu0 0
  %105 = vmatprep.subr.bf16.mxu0 0
  %106 = vmatpush1.bf16.msra.mxu0 0
  %107 = vmatprep.subr.bf16.mxu0 0
  %108 = vmatpush1.bf16.msra.mxu0 0
  %109 = vmatprep.subr.bf16.mxu0 0
  %110 = vmatpush1.bf16.msra.mxu0 0
  %111 = vmatprep.subr.bf16.mxu0 0
  %112 = vmatpush1.bf16.msra.mxu0 0
  %113 = vmatprep.subr.bf16.mxu0 0
  %114 = vmatpush1.bf16.msra.mxu0 0
  %115 = vmatprep.mubr.bf16.mxu0 0
  %116 = vmatmul.mubr.bf16.gmra.mrb[0].mxu0 %v81
  %v117 = vpop.f32.mrb[0].mxu0
  %v118 = vadd.f32 0.0, %v117
  %v119 = vpop.f32.mrb[0].mxu0
  %v120 = vpop.f32.mrb[0].mxu0
  %v121 = vadd.f32 0.0, %v120
  %v122 = vpop.f32.mrb[0].mxu0
  %123 = vdwg.mxu0
  %v124 = vadd.f32 %v38, %v118
  %v125 = vadd.f32 %v39, %v121
  %vm126 = vcmask 261120
  %127 = vst.msk [vmem:[#allocation2] sm:$0xff] %vm126, %v124
  %128 = vst.msk [vmem:[#allocation2 + $0x8] sm:$0xff] %vm126, %v125
  // Predicated region
  $region30: #{transformer_forward.34} parent=0 // pred_check
    %p129 = pneg %p24
  $region31: #{transformer_forward.34} parent=0 // pred_check_branch
    %131 = sbr.rel (%p129) target = $region33
  $region32: #{transformer_forward.34} parent=0 // pred_region
    %v132 = vld [vmem:[#allocation2] sm:$0xff]
    %v133 = vld [vmem:[#allocation2 + $0x8] sm:$0xff]
    %v134 = vld [vmem:[%s3] sm:$0xf]
    %v135 = vld [vmem:[%s3 + $0x4] sm:$0xf]
    %v136 = vunpack.c.l.bf16 %v134
    %v137 = vunpack.c.l.bf16 %v135
    %v138 = vadd.f32 %v132, %v136
    %v139 = vadd.f32 %v133, %v137
    %v140 = vsel %vm126, %v138, 0.0
    %141 = vadd.xlane.f32.xlu0 %v140
    %v142 = vpop.xlane.xlu0 %141
    %v143 = vsel %vm126, %v139, 0.0
    %144 = vadd.xlane.f32.xlu0 %v143
    %v145 = vpop.xlane.xlu0 %144
    %v146 = vrcp.pop 32.0
    %v147 = vmul.f32 %v142, %v146
    %v148 = vmul.f32 %v145, %v146
    %v149 = vsub.f32 %v138, %v147
    %v150 = vsub.f32 %v139, %v148
    %v151 = vmul.f32 %v149, %v149
    %v152 = vmul.f32 %v150, %v150
    %v153 = vsel %vm126, %v151, 0.0
    %154 = vadd.xlane.f32.xlu0 %v153
    %v155 = vpop.xlane.xlu0 %154
    %v156 = vsel %vm126, %v152, 0.0
    %157 = vadd.xlane.f32.xlu0 %v156
    %v158 = vpop.xlane.xlu0 %157
    %v159 = vmul.f32 %v155, %v146
    %v160 = vmul.f32 %v158, %v146
    %v161 = vadd.f32 %v159, 1e-05
    %v162 = vadd.f32 %v160, 1e-05
    %v163 = vrsqrt.pop %v161
    %v164 = vrsqrt.pop %v162
    %v165 = vmul.f32 %v149, %v163
    %v166 = vmul.f32 %v150, %v164
    %v167 = vld [vmem:[%s4] sm:$0x1]
    %v169 = vlaneseq
    %v170 = vshrl.u32 %v169, 7
    %v171 = vsub.s32 0, %v170
    %v172 = vrot.slane %v167, %v171
    %v174 = vmul.f32 %v165, %v172
    %v175 = vmul.f32 %v166, %v172
    %v176 = vld [vmem:[%s5] sm:$0x1]
    %v178 = vlaneseq
    %v179 = vshrl.u32 %v178, 7
    %v180 = vsub.s32 0, %v179
    %v181 = vrot.slane %v176, %v180
    %v183 = vadd.f32 %v174, %v181
    %v184 = vadd.f32 %v175, %v181
    %v185 = vpack.c.bf16 %v184, %v183
    %v187 = vunpack.c.l.b16 %v185
    %v188 = vunpack.c.h.b16 %v185
    %v189 = vpack.c.b16 %v187, %v187
    %v190 = vpack.c.b16 %v188, %v188
    %vm193 = vcmask 257024
    %194 = vst.msk [vmem:[%s6] sm:$0xf] %vm193, %v189
    %195 = vst.msk [vmem:[%s6 + $0x4] sm:$0xf] %vm193, %v190
  $region33: #{transformer_forward.34} parent=0 // pred_fallthru
    _
  // Predicated region
  $region34: #{transformer_forward.34} parent=0 // pred_check
    _
  $region35: #{transformer_forward.34} parent=0 // pred_check_branch
    %197 = sbr.rel (0) target = $region37
  $region36: #{transformer_forward.34} parent=0 // pred_region
    _
  $region37: #{transformer_forward.34} parent=0 // pred_fallthru
    _
  // Predicated region
  $region38: #{transformer_forward.34} parent=0 // pred_check
    _
  $region39: #{transformer_forward.34} parent=0 // pred_check_branch
    %199 = sbr.rel (0) target = $region41
  $region40: #{transformer_forward.34} parent=0 // pred_region
    _
  $region41: #{transformer_forward.34} parent=0 // pred_fallthru
    _

// kernel: transformer_forward.59
$region0: #{transformer_forward.59}
  #allocation0 [shape = 'u32[]', space=smem, size = 0x4, offset = 0x4, fixed_abs, tag = 'smem constant byte address 0x4 - core index']
  #allocation1 [shape = 'u32[144,128]{1,0:T(1,128)}', space=vmem, size = 0x12000, scoped, tag = 'internal scratch']
  #allocation2 [shape = 'f32[16,64]{1,0:T(8,128)}', space=vmem, size = 0x2000, scoped, tag = 'scratch operand']
  %s0 = inlined_call_operand.vmem [shape: bf16[16,32], index: 0, kind: input, shape index: {}]
  %s1 = inlined_call_operand.vmem [shape: bf16[32,64], index: 1, kind: input, shape index: {}]
  %s2 = inlined_call_operand.vmem [shape: f32[1,64], index: 2, kind: input, shape index: {}]
  %s3 = inlined_call_operand.hbm [shape: f32[16,64], index: 3, kind: output, shape index: {}]
  %s4 = sld [smem:[#allocation0]]
  $region30: #{transformer_forward.59} parent=0
    _
  %s6 = ssub.s32 1, %s4
  %s7 = scalar_select 0, %s6, %s4
  $region1: #{transformer_forward.59} parent=0
    #allocation3 [shape = 'u8[8192]{0}', space=vmem, size = 0x2000, scoped, tag = 'output window, operand 0, single buffered']
    #allocation4 [shape = 's32[1]{0}', space=sflag, size = 0x4, scoped, tag = 'scoped memory for transformer_forward.59']
    %8 = vsyncpa [#allocation4], 0
    // Predicated region
    $region2: #{transformer_forward.59} parent=1 // pred_check
      _
    $region3: #{transformer_forward.59} parent=1 // pred_check_branch
      %10 = sbr.rel (0) target = $region5
    $region4: #{transformer_forward.59} parent=1 // pred_region
      _
    $region5: #{transformer_forward.59} parent=1 // pred_fallthru
      _
    // Predicated region
    $region6: #{transformer_forward.59} parent=1 // pred_check
      _
    $region7: #{transformer_forward.59} parent=1 // pred_check_branch
      %12 = sbr.rel (0) target = $region9
    $region8: #{transformer_forward.59} parent=1 // pred_region
      _
    $region9: #{transformer_forward.59} parent=1 // pred_fallthru
      _
    // Predicated region
    $region10: #{transformer_forward.59} parent=1 // pred_check
      _
    $region11: #{transformer_forward.59} parent=1 // pred_check_branch
      %14 = sbr.rel (0) target = $region13
    $region12: #{transformer_forward.59} parent=1 // pred_region
      _
    $region13: #{transformer_forward.59} parent=1 // pred_fallthru
      _
    %p16 = scmp.eq.s32.totalorder 0, 0
    // Predicated region
    $region14: #{transformer_forward.59} parent=1 // pred_check
      %p17 = pneg %p16
    $region15: #{transformer_forward.59} parent=1 // pred_check_branch
      %19 = sbr.rel (%p17) target = $region17
    $region16: #{transformer_forward.59} parent=1 // pred_region
      %v20 = vld [vmem:[%s2] sm:$0x1]
      %v22 = vlaneseq
      %v23 = vshrl.u32 %v22, 7
      %v24 = vsub.s32 0, %v23
      %v25 = vrot.slane %v20, %v24
      %vm27 = vcmask 523264
      %28 = vst.msk [vmem:[#allocation2] sm:$0xff] %vm27, %v25
      %29 = vst.msk [vmem:[#allocation2 + $0x8] sm:$0xff] %vm27, %v25
    $region17: #{transformer_forward.59} parent=1 // pred_fallthru
      _
    %v30 = vld [vmem:[#allocation2] sm:$0xff]
    %v31 = vld [vmem:[#allocation2 + $0x8] sm:$0xff]
    %v32 = vld [vmem:[%s0] sm:$0xf]
    %v33 = vld [vmem:[%s0 + $0x4] sm:$0xf]
    %v34 = vld [vmem:[%s1] sm:$0xf]
    %v35 = vld [vmem:[%s1 + $0x4] sm:$0xf]
    %v36 = vld [vmem:[%s1 + $0x8] sm:$0xf]
    %v37 = vld [vmem:[%s1 + $0xc] sm:$0xf]
    %v40 = vunpack.c.l.b16 %v32
    %v41 = vunpack.c.l.b16 %v33
    %v42 = vpack.c.b16 %v41, %v40
    %v47 = vunpack.c.l.b16 %v34
    %v48 = vunpack.c.l.b16 %v35
    %v49 = vunpack.c.l.b16 %v36
    %v50 = vunpack.c.l.b16 %v37
    %v51 = vpack.c.b16 %v48, %v47
    %v52 = vpack.c.b16 %v50, %v49
    %vm55 = vcmask 261120
    %v57 = vsel %vm55, %v42, 0
    %59 = vmatprep.subr.bf16.mxu0 0
    %60 = vmatpush1.bf16.msra.mxu0 %v51
    %61 = vmatprep.subr.bf16.mxu0 0
    %62 = vmatpush1.bf16.msra.mxu0 %v52
    %63 = vmatprep.subr.bf16.mxu0 0
    %64 = vmatpush1.bf16.msra.mxu0 0
    %65 = vmatprep.subr.bf16.mxu0 0
    %66 = vmatpush1.bf16.msra.mxu0 0
    %67 = vmatprep.subr.bf16.mxu0 0
    %68 = vmatpush1.bf16.msra.mxu0 0
    %69 = vmatprep.subr.bf16.mxu0 0
    %70 = vmatpush1.bf16.msra.mxu0 0
    %71 = vmatprep.subr.bf16.mxu0 0
    %72 = vmatpush1.bf16.msra.mxu0 0
    %73 = vmatprep.subr.bf16.mxu0 0
    %74 = vmatpush1.bf16.msra.mxu0 0
    %75 = vmatprep.subr.bf16.mxu0 0
    %76 = vmatpush1.bf16.msra.mxu0 0
    %77 = vmatprep.subr.bf16.mxu0 0
    %78 = vmatpush1.bf16.msra.mxu0 0
    %79 = vmatprep.subr.bf16.mxu0 0
    %80 = vmatpush1.bf16.msra.mxu0 0
    %81 = vmatprep.subr.bf16.mxu0 0
    %82 = vmatpush1.bf16.msra.mxu0 0
    %83 = vmatprep.subr.bf16.mxu0 0
    %84 = vmatpush1.bf16.msra.mxu0 0
    %85 = vmatprep.subr.bf16.mxu0 0
    %86 = vmatpush1.bf16.msra.mxu0 0
    %87 = vmatprep.subr.bf16.mxu0 0
    %88 = vmatpush1.bf16.msra.mxu0 0
    %89 = vmatprep.subr.bf16.mxu0 0
    %90 = vmatpush1.bf16.msra.mxu0 0
    %91 = vmatprep.mubr.bf16.mxu0 0
    %92 = vmatmul.mubr.bf16.gmra.mrb[0].mxu0 %v57
    %v93 = vpop.f32.mrb[0].mxu0
    %v94 = vadd.f32 0.0, %v93
    %v95 = vpop.f32.mrb[0].mxu0
    %v96 = vpop.f32.mrb[0].mxu0
    %v97 = vadd.f32 0.0, %v96
    %v98 = vpop.f32.mrb[0].mxu0
    %99 = vdwg.mxu0
    %v100 = vadd.f32 %v30, %v94
    %v101 = vadd.f32 %v31, %v97
    %vm102 = vcmask 523264
    %103 = vst.msk [vmem:[#allocation2] sm:$0xff] %vm102, %v100
    %104 = vst.msk [vmem:[#allocation2 + $0x8] sm:$0xff] %vm102, %v101
    // Predicated region
    $region18: #{transformer_forward.59} parent=1 // pred_check
      %p105 = pneg %p16
    $region19: #{transformer_forward.59} parent=1 // pred_check_branch
      %107 = sbr.rel (%p105) target = $region21
    $region20: #{transformer_forward.59} parent=1 // pred_region
      %v108 = vld [vmem:[#allocation2] sm:$0xff]
      %v109 = vld [vmem:[#allocation2 + $0x8] sm:$0xff]
      %110 = vst.msk [vmem:[#allocation3] sm:$0xff] %vm102, %v108
      %111 = vst.msk [vmem:[#allocation3 + $0x8] sm:$0xff] %vm102, %v109
    $region21: #{transformer_forward.59} parent=1 // pred_fallthru
      _
    // Predicated region
    $region22: #{transformer_forward.59} parent=1 // pred_check
      _
    $region23: #{transformer_forward.59} parent=1 // pred_check_branch
      %113 = sbr.rel (0) target = $region25
    $region24: #{transformer_forward.59} parent=1 // pred_region
      %s115 = ssub.s32 256, 256
      %116 = vsyncadd [#allocation4], %s115
      %s117 = sshll.u32 [#allocation3], 4
      %s118 = int_to_ptr.vmem [resolvable:$true] %s117
      %123 = dma.vmem_to_hbm [thread:$0]  %s118, 256, %s3, [#allocation4], 128, 128, 8
    $region25: #{transformer_forward.59} parent=1 // pred_fallthru
      _
    // Predicated region
    $region26: #{transformer_forward.59} parent=1 // pred_check
      _
    $region27: #{transformer_forward.59} parent=1 // pred_check_branch
      %125 = sbr.rel (0) target = $region29
    $region28: #{transformer_forward.59} parent=1 // pred_region
      %126 = dma.done [#allocation4], 256
    $region29: #{transformer_forward.59} parent=1 // pred_fallthru
      _
    %127 = vsyncpa [#allocation4], 1

</llo_original>
